<compile_context>
chip_gen: v7x
topology: tpu7x:2x2x1
jax: 0.10.0
libtpu: 0.0.40
codegen_flags: <defaults>
</compile_context>

<pallas_src>
import numpy as np
import jax
import jax.numpy as jnp
from jax.experimental import pallas as pl
from jax.experimental.pallas import tpu as pltpu


def _bilinear_matrix_np(n_in: int, n_out: int) -> np.ndarray:
    """(n_out, n_in) 1-D interpolation matrix, align_corners=True (matches PyTorch)."""
    A = np.zeros((n_out, n_in), np.float64)
    for i in range(n_out):
        if n_in == 1 or n_out == 1:
            A[i, 0] = 1.0
            continue
        src = i * (n_in - 1) / (n_out - 1)
        lo = min(int(np.floor(src)), n_in - 1)
        hi = min(lo + 1, n_in - 1)
        f = src - lo
        A[i, lo] += 1.0 - f
        A[i, hi] += f
    return A.astype(np.float32)


# ---------------------------------------------------------------------------
# Fused Up.forward (NCHW in / NCHW out, like PyTorch).
# ---------------------------------------------------------------------------
def up_forward(x1_nchw, x2_nchw, p, eps=1e-5):
    N, C1, H1, W1 = x1_nchw.shape
    N2, C2, H2, W2 = x2_nchw.shape
    assert N == N2
    Cmid = p["w1"].shape[0]
    Cout = p["w2"].shape[0]
    Cin1 = C2 + C1
    assert p["w1"].shape[1] == Cin1

    H2u, W2u = 2 * H1, 2 * W1
    diffY, diffX = H2 - H2u, W2 - W2u
    assert diffY >= 0 and diffX >= 0          # TODO(synk): cropping not supported
    padT, padL = diffY // 2, diffX // 2
    HW = H2 * W2
    PAD = max(128, -(-(W2 + 1) // 128) * 128)  # lane-aligned halo, >= W2+1

    # Flattened NCHW views (free metadata reshapes, no transposes).
    x1f = x1_nchw.reshape(N, C1, H1 * W1)
    x2f = x2_nchw.reshape(N, C2, HW)

    # Fold conv bias + BatchNorm (eval, running stats) into per-channel scale/shift.
    def fold(b, g, be, m, v):
        s = g / jnp.sqrt(v + eps)
        return s, (b - m) * s + be

    s1, t1 = fold(p["b1"], p["g1"], p["be1"], p["m1"], p["v1"])
    s2, t2 = fold(p["b2"], p["g2"], p["be2"], p["m2"], p["v2"])
    s1 = s1.reshape(Cmid, 1); t1 = t1.reshape(Cmid, 1)
    s2 = s2.reshape(Cout, 1); t2 = t2.reshape(Cout, 1)

    # 3x3 taps as (9, Cout, Cin): tap k = ky*3+kx <-> offsets (dy, dx) = (ky-1, kx-1).
    # Input-channel order matches concat([x2, x1_up], dim=1).
    w1t = jnp.transpose(p["w1"], (2, 3, 0, 1)).reshape(9, Cmid, Cin1)
    w2t = jnp.transpose(p["w2"], (2, 3, 0, 1)).reshape(9, Cout, Cmid)

    # Separable bilinear-x2 (+ diff zero-pad) matrices on the flattened spatial
    # dim:  x1_up_flat (C1, H2*W2) = (x1_flat @ M1) @ M2
    Aw = _bilinear_matrix_np(W1, W2u)                     # (W2u, W1)
    Ah = _bilinear_matrix_np(H1, H2u)                     # (H2u, H1)
    AwP = np.zeros((W2, W1), np.float32); AwP[padL:padL + W2u] = Aw
    AhP = np.zeros((H2, H1), np.float32); AhP[padT:padT + H2u] = Ah
    M1 = jnp.asarray(np.kron(np.eye(H1, dtype=np.float32), AwP.T))  # (H1*W1, H1*W2)
    M2 = jnp.asarray(np.kron(AhP.T, np.eye(W2, dtype=np.float32)))  # (H1*W2, H2*W2)

    # Column-wrap masks for the shifted windows, indexed by dx+1.
    col = np.arange(HW) % W2
    cmask = jnp.asarray(np.stack([
        (col >= 1).astype(np.float32),
        np.ones(HW, np.float32),
        (col <= W2 - 2).astype(np.float32)], axis=0).reshape(3, 1, HW))

    K1W = H1 * W1
    KMW = H1 * W2

    def kernel(x2_ref, x1_ref, m1_ref, m2_ref, w1_ref, s1_ref, t1_ref,
               w2_ref, s2_ref, t2_ref, cm_ref, o_ref, xpad_ref, hpad_ref):
        f32 = jnp.float32

        # Zero only the (lane-aligned) halos; interiors are fully rewritten below.
        xpad_ref[:, 0:PAD] = jnp.zeros((Cin1, PAD), f32)
        xpad_ref[:, PAD + HW:] = jnp.zeros((Cin1, PAD), f32)
        hpad_ref[:, 0:PAD] = jnp.zeros((Cmid, PAD), f32)
        hpad_ref[:, PAD + HW:] = jnp.zeros((Cmid, PAD), f32)

        # Bilinear x2 upsample (align_corners=True) + diff pad: two matmuls.
        xw = jnp.dot(x1_ref[0].astype(f32), m1_ref[...],
                     preferred_element_type=f32)                     # (C1, H1*W2)
        xup = jnp.dot(xw, m2_ref[...], preferred_element_type=f32)   # (C1, HW)

        # concat([x2, x1_up], channel) written straight into the conv input slab.
        xpad_ref[0:C2, PAD:PAD + HW] = x2_ref[0].astype(f32)
        xpad_ref[C2:Cin1, PAD:PAD + HW] = xup

        def conv3x3_bn_relu(src_ref, w_ref, s_ref, t_ref, n_out):
            # 9 shifted-window matmuls: acc (n_out, HW) += W_tap @ shifted_input.
            acc = jnp.zeros((n_out, HW), f32)
            for dy in (-1, 0, 1):
                for dx in (-1, 0, 1):
                    k = (dy + 1) * 3 + (dx + 1)
                    start = PAD + dy * W2 + dx          # static lane offset
                    xs = src_ref[:, start:start + HW]   # (Cin, HW)
                    if dx != 0:
                        xs = xs * cm_ref[dx + 1]        # mask row-boundary wrap
                    acc = acc + jnp.dot(w_ref[k], xs, preferred_element_type=f32)
            return jnp.maximum(acc * s_ref[...] + t_ref[...], 0.0)

        h = conv3x3_bn_relu(xpad_ref, w1_ref, s1_ref, t1_ref, Cmid)   # (Cmid, HW)
        hpad_ref[:, PAD:PAD + HW] = h
        y = conv3x3_bn_relu(hpad_ref, w2_ref, s2_ref, t2_ref, Cout)   # (Cout, HW)
        o_ref[0] = y.astype(o_ref.dtype)

    out_flat = pl.pallas_call(
        kernel,
        out_shape=jax.ShapeDtypeStruct((N, Cout, HW), x2_nchw.dtype),
        grid=(N,),
        in_specs=[
            pl.BlockSpec((1, C2, HW), lambda n: (n, 0, 0)),
            pl.BlockSpec((1, C1, K1W), lambda n: (n, 0, 0)),
            pl.BlockSpec((K1W, KMW), lambda n: (0, 0)),
            pl.BlockSpec((KMW, HW), lambda n: (0, 0)),
            pl.BlockSpec((9, Cmid, Cin1), lambda n: (0, 0, 0)),
            pl.BlockSpec((Cmid, 1), lambda n: (0, 0)),
            pl.BlockSpec((Cmid, 1), lambda n: (0, 0)),
            pl.BlockSpec((9, Cout, Cmid), lambda n: (0, 0, 0)),
            pl.BlockSpec((Cout, 1), lambda n: (0, 0)),
            pl.BlockSpec((Cout, 1), lambda n: (0, 0)),
            pl.BlockSpec((3, 1, HW), lambda n: (0, 0, 0)),
        ],
        out_specs=pl.BlockSpec((1, Cout, HW), lambda n: (n, 0, 0)),
        scratch_shapes=[
            pltpu.VMEM((Cin1, HW + 2 * PAD), jnp.float32),   # concat(x2, x1_up) + halo
            pltpu.VMEM((Cmid, HW + 2 * PAD), jnp.float32),   # intermediate h + halo
        ],
        compiler_params=pltpu.CompilerParams(
            dimension_semantics=("parallel",),
            vmem_limit_bytes=32 * 1024 * 1024),
    )(x2f, x1f, M1, M2, w1t, s1, t1, w2t, s2, t2, cmask)

    return out_flat.reshape(N, Cout, H2, W2)        # free metadata reshape (NCHW)


# ---------------------------------------------------------------------------
# Pure-JAX reference (NCHW) for correctness check.
# ---------------------------------------------------------------------------
def reference(x1, x2, p, eps=1e-5):
    N, C, H, W = x1.shape
    Ah = jnp.asarray(_bilinear_matrix_np(H, 2 * H))
    Aw = jnp.asarray(_bilinear_matrix_np(W, 2 * W))
    x1u = jnp.einsum("ip,jq,ncpq->ncij", Ah, Aw, x1)
    diffY = x2.shape[2] - x1u.shape[2]
    diffX = x2.shape[3] - x1u.shape[3]
    x1u = jnp.pad(x1u, ((0, 0), (0, 0),
                        (diffY // 2, diffY - diffY // 2),
                        (diffX // 2, diffX - diffX // 2)))
    x = jnp.concatenate([x2, x1u], axis=1)

    def cbr(x, w, b, g, be, m, v):
        y = jax.lax.conv_general_dilated(
            x, w, window_strides=(1, 1), padding=((1, 1), (1, 1)),
            dimension_numbers=("NCHW", "OIHW", "NCHW"))
        y = y + b[None, :, None, None]
        y = (y - m[None, :, None, None]) / jnp.sqrt(v[None, :, None, None] + eps)
        y = y * g[None, :, None, None] + be[None, :, None, None]
        return jnp.maximum(y, 0.0)

    h = cbr(x, p["w1"], p["b1"], p["g1"], p["be1"], p["m1"], p["v1"])
    h = cbr(h, p["w2"], p["b2"], p["g2"], p["be2"], p["m2"], p["v2"])
    return h


if __name__ == "__main__":
    key = jax.random.PRNGKey(0)
    ks = jax.random.split(key, 16)

    # Shapes consistent with Up(in_channels=8, out_channels=4, bilinear=True):
    # x1 (deep features, in_ch//2 channels), x2 (skip features, in_ch//2 channels).
    N = 2
    x1 = jax.random.normal(ks[0], (N, 4, 8, 8), jnp.float32)     # NCHW
    x2 = jax.random.normal(ks[1], (N, 4, 16, 16), jnp.float32)   # NCHW

    in_ch, out_ch = 8, 4
    mid_ch = in_ch // 2                                          # DoubleConv mid

    params = {
        # conv1: in_ch -> mid_ch
        "w1": 0.1 * jax.random.normal(ks[2], (mid_ch, in_ch, 3, 3), jnp.float32),
        "b1": 0.1 * jax.random.normal(ks[3], (mid_ch,), jnp.float32),
        "g1": 0.5 + jax.random.uniform(ks[4], (mid_ch,), jnp.float32),
        "be1": 0.1 * jax.random.normal(ks[5], (mid_ch,), jnp.float32),
        "m1": 0.1 * jax.random.normal(ks[6], (mid_ch,), jnp.float32),
        "v1": 0.5 + jax.random.uniform(ks[7], (mid_ch,), jnp.float32),
        # conv2: mid_ch -> out_ch
        "w2": 0.1 * jax.random.normal(ks[8], (out_ch, mid_ch, 3, 3), jnp.float32),
        "b2": 0.1 * jax.random.normal(ks[9], (out_ch,), jnp.float32),
        "g2": 0.5 + jax.random.uniform(ks[10], (out_ch,), jnp.float32),
        "be2": 0.1 * jax.random.normal(ks[11], (out_ch,), jnp.float32),
        "m2": 0.1 * jax.random.normal(ks[12], (out_ch,), jnp.float32),
        "v2": 0.5 + jax.random.uniform(ks[13], (out_ch,), jnp.float32),
    }

    out = up_forward(x1, x2, params)
    out = jax.block_until_ready(out)

    ref = jax.block_until_ready(reference(x1, x2, params))
    np.testing.assert_allclose(np.asarray(out), np.asarray(ref),
                               atol=2e-4, rtol=2e-4)

    assert out.shape == (N, out_ch, 16, 16)
    print("KERNEL_OK")
</pallas_src>

<mosaic_0001>
module attributes {stable_mosaic.version = 11 : i64} {
  func.func @kernel(%arg0: i32, %arg1: memref<1x4x256xf32, #tpu.memory_space<vmem>>, %arg2: memref<1x4x64xf32, #tpu.memory_space<vmem>>, %arg3: memref<64x128xf32, #tpu.memory_space<vmem>>, %arg4: memref<128x256xf32, #tpu.memory_space<vmem>>, %arg5: memref<9x4x8xf32, #tpu.memory_space<vmem>>, %arg6: memref<4x1xf32, #tpu.memory_space<vmem>>, %arg7: memref<4x1xf32, #tpu.memory_space<vmem>>, %arg8: memref<9x4x4xf32, #tpu.memory_space<vmem>>, %arg9: memref<4x1xf32, #tpu.memory_space<vmem>>, %arg10: memref<4x1xf32, #tpu.memory_space<vmem>>, %arg11: memref<3x1x256xf32, #tpu.memory_space<vmem>>, %arg12: memref<1x4x256xf32, #tpu.memory_space<vmem>>, %arg13: memref<8x512xf32, #tpu.memory_space<vmem>>, %arg14: memref<4x512xf32, #tpu.memory_space<vmem>>) attributes {dimension_semantics = [#tpu.dimension_semantics<parallel>], iteration_bounds = array<i64: 2>, scalar_prefetch = 0 : i64, scratch_operands = 2 : i64, tpu.core_type = #tpu.core_type<tc>, window_params = [{transform_indices = @transform_0, window_bounds = array<i64: 1, 4, 256>}, {transform_indices = @transform_1, window_bounds = array<i64: 1, 4, 64>}, {pipeline_mode = #tpu.pipeline_mode<synchronous>, transform_indices = @transform_2, window_bounds = array<i64: 64, 128>}, {pipeline_mode = #tpu.pipeline_mode<synchronous>, transform_indices = @transform_3, window_bounds = array<i64: 128, 256>}, {pipeline_mode = #tpu.pipeline_mode<synchronous>, transform_indices = @transform_4, window_bounds = array<i64: 9, 4, 8>}, {pipeline_mode = #tpu.pipeline_mode<synchronous>, transform_indices = @transform_5, window_bounds = array<i64: 4, 1>}, {pipeline_mode = #tpu.pipeline_mode<synchronous>, transform_indices = @transform_6, window_bounds = array<i64: 4, 1>}, {pipeline_mode = #tpu.pipeline_mode<synchronous>, transform_indices = @transform_7, window_bounds = array<i64: 9, 4, 4>}, {pipeline_mode = #tpu.pipeline_mode<synchronous>, transform_indices = @transform_8, window_bounds = array<i64: 4, 1>}, {pipeline_mode = #tpu.pipeline_mode<synchronous>, transform_indices = @transform_9, window_bounds = array<i64: 4, 1>}, {pipeline_mode = #tpu.pipeline_mode<synchronous>, transform_indices = @transform_10, window_bounds = array<i64: 3, 1, 256>}, {transform_indices = @transform_11, window_bounds = array<i64: 1, 4, 256>}]} {
    %cst = arith.constant 0.000000e+00 : f32
    %0 = vector.broadcast %cst : f32 to vector<8x128xf32>
    %c0 = arith.constant 0 : index
    %c0_0 = arith.constant 0 : index
    %1 = vector.load %arg13[%c0, %c0_0] : memref<8x512xf32, #tpu.memory_space<vmem>>, vector<8x128xf32>
    tpu.vector_store %arg13[%c0, %c0_0], %0 {strides = array<i32>} : memref<8x512xf32, #tpu.memory_space<vmem>>, vector<8x128xf32>,
    %cst_1 = arith.constant 0.000000e+00 : f32
    %2 = vector.broadcast %cst_1 : f32 to vector<8x128xf32>
    %c0_2 = arith.constant 0 : index
    %c384 = arith.constant 384 : index
    %3 = vector.load %arg13[%c0_2, %c384] : memref<8x512xf32, #tpu.memory_space<vmem>>, vector<8x128xf32>
    tpu.vector_store %arg13[%c0_2, %c384], %2 {strides = array<i32>} : memref<8x512xf32, #tpu.memory_space<vmem>>, vector<8x128xf32>,
    %cst_3 = arith.constant 0.000000e+00 : f32
    %4 = vector.broadcast %cst_3 : f32 to vector<4x128xf32>
    %c0_4 = arith.constant 0 : index
    %c0_5 = arith.constant 0 : index
    %5 = vector.load %arg14[%c0_4, %c0_5] : memref<4x512xf32, #tpu.memory_space<vmem>>, vector<4x128xf32>
    tpu.vector_store %arg14[%c0_4, %c0_5], %4 {strides = array<i32>} : memref<4x512xf32, #tpu.memory_space<vmem>>, vector<4x128xf32>,
    %cst_6 = arith.constant 0.000000e+00 : f32
    %6 = vector.broadcast %cst_6 : f32 to vector<4x128xf32>
    %c0_7 = arith.constant 0 : index
    %c384_8 = arith.constant 384 : index
    %7 = vector.load %arg14[%c0_7, %c384_8] : memref<4x512xf32, #tpu.memory_space<vmem>>, vector<4x128xf32>
    tpu.vector_store %arg14[%c0_7, %c384_8], %6 {strides = array<i32>} : memref<4x512xf32, #tpu.memory_space<vmem>>, vector<4x128xf32>,
    %c0_9 = arith.constant 0 : index
    %c0_10 = arith.constant 0 : index
    %c0_11 = arith.constant 0 : index
    %8 = vector.load %arg2[%c0_9, %c0_10, %c0_11] : memref<1x4x64xf32, #tpu.memory_space<vmem>>, vector<1x4x64xf32>
    %9 = vector.shape_cast %8 : vector<1x4x64xf32> to vector<4x64xf32>
    %c0_12 = arith.constant 0 : index
    %c0_13 = arith.constant 0 : index
    %10 = vector.load %arg3[%c0_12, %c0_13] : memref<64x128xf32, #tpu.memory_space<vmem>>, vector<64x128xf32>
    %cst_14 = arith.constant dense<0.000000e+00> : vector<4x128xf32>
    %11 = tpu.matmul %9, %10, %cst_14 {dimension_numbers = #tpu.dot_dimension_numbers<[1], [0], [0], [1], [0, 0, 1, 1], [], []>} : vector<4x64xf32>, vector<64x128xf32>, vector<4x128xf32> -> vector<4x128xf32>
    %c0_15 = arith.constant 0 : index
    %c0_16 = arith.constant 0 : index
    %12 = vector.load %arg4[%c0_15, %c0_16] : memref<128x256xf32, #tpu.memory_space<vmem>>, vector<128x256xf32>
    %cst_17 = arith.constant dense<0.000000e+00> : vector<4x256xf32>
    %13 = tpu.matmul %11, %12, %cst_17 {dimension_numbers = #tpu.dot_dimension_numbers<[1], [0], [0], [1], [0, 0, 1, 1], [], []>} : vector<4x128xf32>, vector<128x256xf32>, vector<4x256xf32> -> vector<4x256xf32>
    %c0_18 = arith.constant 0 : index
    %c0_19 = arith.constant 0 : index
    %c0_20 = arith.constant 0 : index
    %14 = vector.load %arg1[%c0_18, %c0_19, %c0_20] : memref<1x4x256xf32, #tpu.memory_space<vmem>>, vector<1x4x256xf32>
    %15 = vector.shape_cast %14 : vector<1x4x256xf32> to vector<4x256xf32>
    %c0_21 = arith.constant 0 : index
    %c128 = arith.constant 128 : index
    %16 = vector.load %arg13[%c0_21, %c128] : memref<8x512xf32, #tpu.memory_space<vmem>>, vector<4x256xf32>
    tpu.vector_store %arg13[%c0_21, %c128], %15 {strides = array<i32>} : memref<8x512xf32, #tpu.memory_space<vmem>>, vector<4x256xf32>,
    %c4 = arith.constant 4 : index
    %c128_22 = arith.constant 128 : index
    %17 = vector.load %arg13[%c4, %c128_22] : memref<8x512xf32, #tpu.memory_space<vmem>>, vector<4x256xf32>
    tpu.vector_store %arg13[%c4, %c128_22], %13 {strides = array<i32>} : memref<8x512xf32, #tpu.memory_space<vmem>>, vector<4x256xf32>,
    %cst_23 = arith.constant 0.000000e+00 : f32
    %18 = vector.broadcast %cst_23 : f32 to vector<4x256xf32>
    %c0_24 = arith.constant 0 : index
    %c111 = arith.constant 111 : index
    %19 = vector.load %arg13[%c0_24, %c111] : memref<8x512xf32, #tpu.memory_space<vmem>>, vector<8x256xf32>
    %c0_25 = arith.constant 0 : index
    %c0_26 = arith.constant 0 : index
    %c0_27 = arith.constant 0 : index
    %20 = vector.load %arg11[%c0_25, %c0_26, %c0_27] : memref<3x1x256xf32, #tpu.memory_space<vmem>>, vector<1x1x256xf32>
    %21 = vector.shape_cast %20 : vector<1x1x256xf32> to vector<1x256xf32>
    %22 = vector.broadcast %21 : vector<1x256xf32> to vector<8x256xf32>
    %23 = arith.mulf %19, %22 : vector<8x256xf32>
    %c0_28 = arith.constant 0 : index
    %c0_29 = arith.constant 0 : index
    %c0_30 = arith.constant 0 : index
    %24 = vector.load %arg5[%c0_28, %c0_29, %c0_30] : memref<9x4x8xf32, #tpu.memory_space<vmem>>, vector<1x4x8xf32>
    %25 = vector.shape_cast %24 : vector<1x4x8xf32> to vector<4x8xf32>
    %cst_31 = arith.constant dense<0.000000e+00> : vector<4x256xf32>
    %26 = tpu.matmul %25, %23, %cst_31 {dimension_numbers = #tpu.dot_dimension_numbers<[1], [0], [0], [1], [0, 0, 1, 1], [], []>} : vector<4x8xf32>, vector<8x256xf32>, vector<4x256xf32> -> vector<4x256xf32>
    %27 = arith.addf %18, %26 : vector<4x256xf32>
    %c0_32 = arith.constant 0 : index
    %c112 = arith.constant 112 : index
    %28 = vector.load %arg13[%c0_32, %c112] : memref<8x512xf32, #tpu.memory_space<vmem>>, vector<8x256xf32>
    %c1 = arith.constant 1 : index
    %c0_33 = arith.constant 0 : index
    %c0_34 = arith.constant 0 : index
    %29 = vector.load %arg5[%c1, %c0_33, %c0_34] : memref<9x4x8xf32, #tpu.memory_space<vmem>>, vector<1x4x8xf32>
    %30 = vector.shape_cast %29 : vector<1x4x8xf32> to vector<4x8xf32>
    %cst_35 = arith.constant dense<0.000000e+00> : vector<4x256xf32>
    %31 = tpu.matmul %30, %28, %cst_35 {dimension_numbers = #tpu.dot_dimension_numbers<[1], [0], [0], [1], [0, 0, 1, 1], [], []>} : vector<4x8xf32>, vector<8x256xf32>, vector<4x256xf32> -> vector<4x256xf32>
    %32 = arith.addf %27, %31 : vector<4x256xf32>
    %c0_36 = arith.constant 0 : index
    %c113 = arith.constant 113 : index
    %33 = vector.load %arg13[%c0_36, %c113] : memref<8x512xf32, #tpu.memory_space<vmem>>, vector<8x256xf32>
    %c2 = arith.constant 2 : index
    %c0_37 = arith.constant 0 : index
    %c0_38 = arith.constant 0 : index
    %34 = vector.load %arg11[%c2, %c0_37, %c0_38] : memref<3x1x256xf32, #tpu.memory_space<vmem>>, vector<1x1x256xf32>
    %35 = vector.shape_cast %34 : vector<1x1x256xf32> to vector<1x256xf32>
    %36 = vector.broadcast %35 : vector<1x256xf32> to vector<8x256xf32>
    %37 = arith.mulf %33, %36 : vector<8x256xf32>
    %c2_39 = arith.constant 2 : index
    %c0_40 = arith.constant 0 : index
    %c0_41 = arith.constant 0 : index
    %38 = vector.load %arg5[%c2_39, %c0_40, %c0_41] : memref<9x4x8xf32, #tpu.memory_space<vmem>>, vector<1x4x8xf32>
    %39 = vector.shape_cast %38 : vector<1x4x8xf32> to vector<4x8xf32>
    %cst_42 = arith.constant dense<0.000000e+00> : vector<4x256xf32>
    %40 = tpu.matmul %39, %37, %cst_42 {dimension_numbers = #tpu.dot_dimension_numbers<[1], [0], [0], [1], [0, 0, 1, 1], [], []>} : vector<4x8xf32>, vector<8x256xf32>, vector<4x256xf32> -> vector<4x256xf32>
    %41 = arith.addf %32, %40 : vector<4x256xf32>
    %c0_43 = arith.constant 0 : index
    %c127 = arith.constant 127 : index
    %42 = vector.load %arg13[%c0_43, %c127] : memref<8x512xf32, #tpu.memory_space<vmem>>, vector<8x256xf32>
    %c0_44 = arith.constant 0 : index
    %c0_45 = arith.constant 0 : index
    %c0_46 = arith.constant 0 : index
    %43 = vector.load %arg11[%c0_44, %c0_45, %c0_46] : memref<3x1x256xf32, #tpu.memory_space<vmem>>, vector<1x1x256xf32>
    %44 = vector.shape_cast %43 : vector<1x1x256xf32> to vector<1x256xf32>
    %45 = vector.broadcast %44 : vector<1x256xf32> to vector<8x256xf32>
    %46 = arith.mulf %42, %45 : vector<8x256xf32>
    %c3 = arith.constant 3 : index
    %c0_47 = arith.constant 0 : index
    %c0_48 = arith.constant 0 : index
    %47 = vector.load %arg5[%c3, %c0_47, %c0_48] : memref<9x4x8xf32, #tpu.memory_space<vmem>>, vector<1x4x8xf32>
    %48 = vector.shape_cast %47 : vector<1x4x8xf32> to vector<4x8xf32>
    %cst_49 = arith.constant dense<0.000000e+00> : vector<4x256xf32>
    %49 = tpu.matmul %48, %46, %cst_49 {dimension_numbers = #tpu.dot_dimension_numbers<[1], [0], [0], [1], [0, 0, 1, 1], [], []>} : vector<4x8xf32>, vector<8x256xf32>, vector<4x256xf32> -> vector<4x256xf32>
    %50 = arith.addf %41, %49 : vector<4x256xf32>
    %c0_50 = arith.constant 0 : index
    %c128_51 = arith.constant 128 : index
    %51 = vector.load %arg13[%c0_50, %c128_51] : memref<8x512xf32, #tpu.memory_space<vmem>>, vector<8x256xf32>
    %c4_52 = arith.constant 4 : index
    %c0_53 = arith.constant 0 : index
    %c0_54 = arith.constant 0 : index
    %52 = vector.load %arg5[%c4_52, %c0_53, %c0_54] : memref<9x4x8xf32, #tpu.memory_space<vmem>>, vector<1x4x8xf32>
    %53 = vector.shape_cast %52 : vector<1x4x8xf32> to vector<4x8xf32>
    %cst_55 = arith.constant dense<0.000000e+00> : vector<4x256xf32>
    %54 = tpu.matmul %53, %51, %cst_55 {dimension_numbers = #tpu.dot_dimension_numbers<[1], [0], [0], [1], [0, 0, 1, 1], [], []>} : vector<4x8xf32>, vector<8x256xf32>, vector<4x256xf32> -> vector<4x256xf32>
    %55 = arith.addf %50, %54 : vector<4x256xf32>
    %c0_56 = arith.constant 0 : index
    %c129 = arith.constant 129 : index
    %56 = vector.load %arg13[%c0_56, %c129] : memref<8x512xf32, #tpu.memory_space<vmem>>, vector<8x256xf32>
    %c2_57 = arith.constant 2 : index
    %c0_58 = arith.constant 0 : index
    %c0_59 = arith.constant 0 : index
    %57 = vector.load %arg11[%c2_57, %c0_58, %c0_59] : memref<3x1x256xf32, #tpu.memory_space<vmem>>, vector<1x1x256xf32>
    %58 = vector.shape_cast %57 : vector<1x1x256xf32> to vector<1x256xf32>
    %59 = vector.broadcast %58 : vector<1x256xf32> to vector<8x256xf32>
    %60 = arith.mulf %56, %59 : vector<8x256xf32>
    %c5 = arith.constant 5 : index
    %c0_60 = arith.constant 0 : index
    %c0_61 = arith.constant 0 : index
    %61 = vector.load %arg5[%c5, %c0_60, %c0_61] : memref<9x4x8xf32, #tpu.memory_space<vmem>>, vector<1x4x8xf32>
    %62 = vector.shape_cast %61 : vector<1x4x8xf32> to vector<4x8xf32>
    %cst_62 = arith.constant dense<0.000000e+00> : vector<4x256xf32>
    %63 = tpu.matmul %62, %60, %cst_62 {dimension_numbers = #tpu.dot_dimension_numbers<[1], [0], [0], [1], [0, 0, 1, 1], [], []>} : vector<4x8xf32>, vector<8x256xf32>, vector<4x256xf32> -> vector<4x256xf32>
    %64 = arith.addf %55, %63 : vector<4x256xf32>
    %c0_63 = arith.constant 0 : index
    %c143 = arith.constant 143 : index
    %65 = vector.load %arg13[%c0_63, %c143] : memref<8x512xf32, #tpu.memory_space<vmem>>, vector<8x256xf32>
    %c0_64 = arith.constant 0 : index
    %c0_65 = arith.constant 0 : index
    %c0_66 = arith.constant 0 : index
    %66 = vector.load %arg11[%c0_64, %c0_65, %c0_66] : memref<3x1x256xf32, #tpu.memory_space<vmem>>, vector<1x1x256xf32>
    %67 = vector.shape_cast %66 : vector<1x1x256xf32> to vector<1x256xf32>
    %68 = vector.broadcast %67 : vector<1x256xf32> to vector<8x256xf32>
    %69 = arith.mulf %65, %68 : vector<8x256xf32>
    %c6 = arith.constant 6 : index
    %c0_67 = arith.constant 0 : index
    %c0_68 = arith.constant 0 : index
    %70 = vector.load %arg5[%c6, %c0_67, %c0_68] : memref<9x4x8xf32, #tpu.memory_space<vmem>>, vector<1x4x8xf32>
    %71 = vector.shape_cast %70 : vector<1x4x8xf32> to vector<4x8xf32>
    %cst_69 = arith.constant dense<0.000000e+00> : vector<4x256xf32>
    %72 = tpu.matmul %71, %69, %cst_69 {dimension_numbers = #tpu.dot_dimension_numbers<[1], [0], [0], [1], [0, 0, 1, 1], [], []>} : vector<4x8xf32>, vector<8x256xf32>, vector<4x256xf32> -> vector<4x256xf32>
    %73 = arith.addf %64, %72 : vector<4x256xf32>
    %c0_70 = arith.constant 0 : index
    %c144 = arith.constant 144 : index
    %74 = vector.load %arg13[%c0_70, %c144] : memref<8x512xf32, #tpu.memory_space<vmem>>, vector<8x256xf32>
    %c7 = arith.constant 7 : index
    %c0_71 = arith.constant 0 : index
    %c0_72 = arith.constant 0 : index
    %75 = vector.load %arg5[%c7, %c0_71, %c0_72] : memref<9x4x8xf32, #tpu.memory_space<vmem>>, vector<1x4x8xf32>
    %76 = vector.shape_cast %75 : vector<1x4x8xf32> to vector<4x8xf32>
    %cst_73 = arith.constant dense<0.000000e+00> : vector<4x256xf32>
    %77 = tpu.matmul %76, %74, %cst_73 {dimension_numbers = #tpu.dot_dimension_numbers<[1], [0], [0], [1], [0, 0, 1, 1], [], []>} : vector<4x8xf32>, vector<8x256xf32>, vector<4x256xf32> -> vector<4x256xf32>
    %78 = arith.addf %73, %77 : vector<4x256xf32>
    %c0_74 = arith.constant 0 : index
    %c145 = arith.constant 145 : index
    %79 = vector.load %arg13[%c0_74, %c145] : memref<8x512xf32, #tpu.memory_space<vmem>>, vector<8x256xf32>
    %c2_75 = arith.constant 2 : index
    %c0_76 = arith.constant 0 : index
    %c0_77 = arith.constant 0 : index
    %80 = vector.load %arg11[%c2_75, %c0_76, %c0_77] : memref<3x1x256xf32, #tpu.memory_space<vmem>>, vector<1x1x256xf32>
    %81 = vector.shape_cast %80 : vector<1x1x256xf32> to vector<1x256xf32>
    %82 = vector.broadcast %81 : vector<1x256xf32> to vector<8x256xf32>
    %83 = arith.mulf %79, %82 : vector<8x256xf32>
    %c8 = arith.constant 8 : index
    %c0_78 = arith.constant 0 : index
    %c0_79 = arith.constant 0 : index
    %84 = vector.load %arg5[%c8, %c0_78, %c0_79] : memref<9x4x8xf32, #tpu.memory_space<vmem>>, vector<1x4x8xf32>
    %85 = vector.shape_cast %84 : vector<1x4x8xf32> to vector<4x8xf32>
    %cst_80 = arith.constant dense<0.000000e+00> : vector<4x256xf32>
    %86 = tpu.matmul %85, %83, %cst_80 {dimension_numbers = #tpu.dot_dimension_numbers<[1], [0], [0], [1], [0, 0, 1, 1], [], []>} : vector<4x8xf32>, vector<8x256xf32>, vector<4x256xf32> -> vector<4x256xf32>
    %87 = arith.addf %78, %86 : vector<4x256xf32>
    %c0_81 = arith.constant 0 : index
    %c0_82 = arith.constant 0 : index
    %88 = vector.load %arg6[%c0_81, %c0_82] : memref<4x1xf32, #tpu.memory_space<vmem>>, vector<4x1xf32>
    %89 = vector.broadcast %88 : vector<4x1xf32> to vector<4x256xf32>
    %90 = arith.mulf %87, %89 : vector<4x256xf32>
    %c0_83 = arith.constant 0 : index
    %c0_84 = arith.constant 0 : index
    %91 = vector.load %arg7[%c0_83, %c0_84] : memref<4x1xf32, #tpu.memory_space<vmem>>, vector<4x1xf32>
    %92 = vector.broadcast %91 : vector<4x1xf32> to vector<4x256xf32>
    %93 = arith.addf %90, %92 : vector<4x256xf32>
    %cst_85 = arith.constant 0.000000e+00 : f32
    %94 = vector.broadcast %cst_85 : f32 to vector<4x256xf32>
    %95 = arith.maximumf %93, %94 : vector<4x256xf32>
    %c0_86 = arith.constant 0 : index
    %c128_87 = arith.constant 128 : index
    %96 = vector.load %arg14[%c0_86, %c128_87] : memref<4x512xf32, #tpu.memory_space<vmem>>, vector<4x256xf32>
    tpu.vector_store %arg14[%c0_86, %c128_87], %95 {strides = array<i32>} : memref<4x512xf32, #tpu.memory_space<vmem>>, vector<4x256xf32>,
    %cst_88 = arith.constant 0.000000e+00 : f32
    %97 = vector.broadcast %cst_88 : f32 to vector<4x256xf32>
    %c0_89 = arith.constant 0 : index
    %c111_90 = arith.constant 111 : index
    %98 = vector.load %arg14[%c0_89, %c111_90] : memref<4x512xf32, #tpu.memory_space<vmem>>, vector<4x256xf32>
    %c0_91 = arith.constant 0 : index
    %c0_92 = arith.constant 0 : index
    %c0_93 = arith.constant 0 : index
    %99 = vector.load %arg11[%c0_91, %c0_92, %c0_93] : memref<3x1x256xf32, #tpu.memory_space<vmem>>, vector<1x1x256xf32>
    %100 = vector.shape_cast %99 : vector<1x1x256xf32> to vector<1x256xf32>
    %101 = vector.broadcast %100 : vector<1x256xf32> to vector<4x256xf32>
    %102 = arith.mulf %98, %101 : vector<4x256xf32>
    %c0_94 = arith.constant 0 : index
    %c0_95 = arith.constant 0 : index
    %c0_96 = arith.constant 0 : index
    %103 = vector.load %arg8[%c0_94, %c0_95, %c0_96] : memref<9x4x4xf32, #tpu.memory_space<vmem>>, vector<1x4x4xf32>
    %104 = vector.shape_cast %103 : vector<1x4x4xf32> to vector<4x4xf32>
    %cst_97 = arith.constant dense<0.000000e+00> : vector<4x256xf32>
    %105 = tpu.matmul %104, %102, %cst_97 {dimension_numbers = #tpu.dot_dimension_numbers<[1], [0], [0], [1], [0, 0, 1, 1], [], []>} : vector<4x4xf32>, vector<4x256xf32>, vector<4x256xf32> -> vector<4x256xf32>
    %106 = arith.addf %97, %105 : vector<4x256xf32>
    %c0_98 = arith.constant 0 : index
    %c112_99 = arith.constant 112 : index
    %107 = vector.load %arg14[%c0_98, %c112_99] : memref<4x512xf32, #tpu.memory_space<vmem>>, vector<4x256xf32>
    %c1_100 = arith.constant 1 : index
    %c0_101 = arith.constant 0 : index
    %c0_102 = arith.constant 0 : index
    %108 = vector.load %arg8[%c1_100, %c0_101, %c0_102] : memref<9x4x4xf32, #tpu.memory_space<vmem>>, vector<1x4x4xf32>
    %109 = vector.shape_cast %108 : vector<1x4x4xf32> to vector<4x4xf32>
    %cst_103 = arith.constant dense<0.000000e+00> : vector<4x256xf32>
    %110 = tpu.matmul %109, %107, %cst_103 {dimension_numbers = #tpu.dot_dimension_numbers<[1], [0], [0], [1], [0, 0, 1, 1], [], []>} : vector<4x4xf32>, vector<4x256xf32>, vector<4x256xf32> -> vector<4x256xf32>
    %111 = arith.addf %106, %110 : vector<4x256xf32>
    %c0_104 = arith.constant 0 : index
    %c113_105 = arith.constant 113 : index
    %112 = vector.load %arg14[%c0_104, %c113_105] : memref<4x512xf32, #tpu.memory_space<vmem>>, vector<4x256xf32>
    %c2_106 = arith.constant 2 : index
    %c0_107 = arith.constant 0 : index
    %c0_108 = arith.constant 0 : index
    %113 = vector.load %arg11[%c2_106, %c0_107, %c0_108] : memref<3x1x256xf32, #tpu.memory_space<vmem>>, vector<1x1x256xf32>
    %114 = vector.shape_cast %113 : vector<1x1x256xf32> to vector<1x256xf32>
    %115 = vector.broadcast %114 : vector<1x256xf32> to vector<4x256xf32>
    %116 = arith.mulf %112, %115 : vector<4x256xf32>
    %c2_109 = arith.constant 2 : index
    %c0_110 = arith.constant 0 : index
    %c0_111 = arith.constant 0 : index
    %117 = vector.load %arg8[%c2_109, %c0_110, %c0_111] : memref<9x4x4xf32, #tpu.memory_space<vmem>>, vector<1x4x4xf32>
    %118 = vector.shape_cast %117 : vector<1x4x4xf32> to vector<4x4xf32>
    %cst_112 = arith.constant dense<0.000000e+00> : vector<4x256xf32>
    %119 = tpu.matmul %118, %116, %cst_112 {dimension_numbers = #tpu.dot_dimension_numbers<[1], [0], [0], [1], [0, 0, 1, 1], [], []>} : vector<4x4xf32>, vector<4x256xf32>, vector<4x256xf32> -> vector<4x256xf32>
    %120 = arith.addf %111, %119 : vector<4x256xf32>
    %c0_113 = arith.constant 0 : index
    %c127_114 = arith.constant 127 : index
    %121 = vector.load %arg14[%c0_113, %c127_114] : memref<4x512xf32, #tpu.memory_space<vmem>>, vector<4x256xf32>
    %c0_115 = arith.constant 0 : index
    %c0_116 = arith.constant 0 : index
    %c0_117 = arith.constant 0 : index
    %122 = vector.load %arg11[%c0_115, %c0_116, %c0_117] : memref<3x1x256xf32, #tpu.memory_space<vmem>>, vector<1x1x256xf32>
    %123 = vector.shape_cast %122 : vector<1x1x256xf32> to vector<1x256xf32>
    %124 = vector.broadcast %123 : vector<1x256xf32> to vector<4x256xf32>
    %125 = arith.mulf %121, %124 : vector<4x256xf32>
    %c3_118 = arith.constant 3 : index
    %c0_119 = arith.constant 0 : index
    %c0_120 = arith.constant 0 : index
    %126 = vector.load %arg8[%c3_118, %c0_119, %c0_120] : memref<9x4x4xf32, #tpu.memory_space<vmem>>, vector<1x4x4xf32>
    %127 = vector.shape_cast %126 : vector<1x4x4xf32> to vector<4x4xf32>
    %cst_121 = arith.constant dense<0.000000e+00> : vector<4x256xf32>
    %128 = tpu.matmul %127, %125, %cst_121 {dimension_numbers = #tpu.dot_dimension_numbers<[1], [0], [0], [1], [0, 0, 1, 1], [], []>} : vector<4x4xf32>, vector<4x256xf32>, vector<4x256xf32> -> vector<4x256xf32>
    %129 = arith.addf %120, %128 : vector<4x256xf32>
    %c0_122 = arith.constant 0 : index
    %c128_123 = arith.constant 128 : index
    %130 = vector.load %arg14[%c0_122, %c128_123] : memref<4x512xf32, #tpu.memory_space<vmem>>, vector<4x256xf32>
    %c4_124 = arith.constant 4 : index
    %c0_125 = arith.constant 0 : index
    %c0_126 = arith.constant 0 : index
    %131 = vector.load %arg8[%c4_124, %c0_125, %c0_126] : memref<9x4x4xf32, #tpu.memory_space<vmem>>, vector<1x4x4xf32>
    %132 = vector.shape_cast %131 : vector<1x4x4xf32> to vector<4x4xf32>
    %cst_127 = arith.constant dense<0.000000e+00> : vector<4x256xf32>
    %133 = tpu.matmul %132, %130, %cst_127 {dimension_numbers = #tpu.dot_dimension_numbers<[1], [0], [0], [1], [0, 0, 1, 1], [], []>} : vector<4x4xf32>, vector<4x256xf32>, vector<4x256xf32> -> vector<4x256xf32>
    %134 = arith.addf %129, %133 : vector<4x256xf32>
    %c0_128 = arith.constant 0 : index
    %c129_129 = arith.constant 129 : index
    %135 = vector.load %arg14[%c0_128, %c129_129] : memref<4x512xf32, #tpu.memory_space<vmem>>, vector<4x256xf32>
    %c2_130 = arith.constant 2 : index
    %c0_131 = arith.constant 0 : index
    %c0_132 = arith.constant 0 : index
    %136 = vector.load %arg11[%c2_130, %c0_131, %c0_132] : memref<3x1x256xf32, #tpu.memory_space<vmem>>, vector<1x1x256xf32>
    %137 = vector.shape_cast %136 : vector<1x1x256xf32> to vector<1x256xf32>
    %138 = vector.broadcast %137 : vector<1x256xf32> to vector<4x256xf32>
    %139 = arith.mulf %135, %138 : vector<4x256xf32>
    %c5_133 = arith.constant 5 : index
    %c0_134 = arith.constant 0 : index
    %c0_135 = arith.constant 0 : index
    %140 = vector.load %arg8[%c5_133, %c0_134, %c0_135] : memref<9x4x4xf32, #tpu.memory_space<vmem>>, vector<1x4x4xf32>
    %141 = vector.shape_cast %140 : vector<1x4x4xf32> to vector<4x4xf32>
    %cst_136 = arith.constant dense<0.000000e+00> : vector<4x256xf32>
    %142 = tpu.matmul %141, %139, %cst_136 {dimension_numbers = #tpu.dot_dimension_numbers<[1], [0], [0], [1], [0, 0, 1, 1], [], []>} : vector<4x4xf32>, vector<4x256xf32>, vector<4x256xf32> -> vector<4x256xf32>
    %143 = arith.addf %134, %142 : vector<4x256xf32>
    %c0_137 = arith.constant 0 : index
    %c143_138 = arith.constant 143 : index
    %144 = vector.load %arg14[%c0_137, %c143_138] : memref<4x512xf32, #tpu.memory_space<vmem>>, vector<4x256xf32>
    %c0_139 = arith.constant 0 : index
    %c0_140 = arith.constant 0 : index
    %c0_141 = arith.constant 0 : index
    %145 = vector.load %arg11[%c0_139, %c0_140, %c0_141] : memref<3x1x256xf32, #tpu.memory_space<vmem>>, vector<1x1x256xf32>
    %146 = vector.shape_cast %145 : vector<1x1x256xf32> to vector<1x256xf32>
    %147 = vector.broadcast %146 : vector<1x256xf32> to vector<4x256xf32>
    %148 = arith.mulf %144, %147 : vector<4x256xf32>
    %c6_142 = arith.constant 6 : index
    %c0_143 = arith.constant 0 : index
    %c0_144 = arith.constant 0 : index
    %149 = vector.load %arg8[%c6_142, %c0_143, %c0_144] : memref<9x4x4xf32, #tpu.memory_space<vmem>>, vector<1x4x4xf32>
    %150 = vector.shape_cast %149 : vector<1x4x4xf32> to vector<4x4xf32>
    %cst_145 = arith.constant dense<0.000000e+00> : vector<4x256xf32>
    %151 = tpu.matmul %150, %148, %cst_145 {dimension_numbers = #tpu.dot_dimension_numbers<[1], [0], [0], [1], [0, 0, 1, 1], [], []>} : vector<4x4xf32>, vector<4x256xf32>, vector<4x256xf32> -> vector<4x256xf32>
    %152 = arith.addf %143, %151 : vector<4x256xf32>
    %c0_146 = arith.constant 0 : index
    %c144_147 = arith.constant 144 : index
    %153 = vector.load %arg14[%c0_146, %c144_147] : memref<4x512xf32, #tpu.memory_space<vmem>>, vector<4x256xf32>
    %c7_148 = arith.constant 7 : index
    %c0_149 = arith.constant 0 : index
    %c0_150 = arith.constant 0 : index
    %154 = vector.load %arg8[%c7_148, %c0_149, %c0_150] : memref<9x4x4xf32, #tpu.memory_space<vmem>>, vector<1x4x4xf32>
    %155 = vector.shape_cast %154 : vector<1x4x4xf32> to vector<4x4xf32>
    %cst_151 = arith.constant dense<0.000000e+00> : vector<4x256xf32>
    %156 = tpu.matmul %155, %153, %cst_151 {dimension_numbers = #tpu.dot_dimension_numbers<[1], [0], [0], [1], [0, 0, 1, 1], [], []>} : vector<4x4xf32>, vector<4x256xf32>, vector<4x256xf32> -> vector<4x256xf32>
    %157 = arith.addf %152, %156 : vector<4x256xf32>
    %c0_152 = arith.constant 0 : index
    %c145_153 = arith.constant 145 : index
    %158 = vector.load %arg14[%c0_152, %c145_153] : memref<4x512xf32, #tpu.memory_space<vmem>>, vector<4x256xf32>
    %c2_154 = arith.constant 2 : index
    %c0_155 = arith.constant 0 : index
    %c0_156 = arith.constant 0 : index
    %159 = vector.load %arg11[%c2_154, %c0_155, %c0_156] : memref<3x1x256xf32, #tpu.memory_space<vmem>>, vector<1x1x256xf32>
    %160 = vector.shape_cast %159 : vector<1x1x256xf32> to vector<1x256xf32>
    %161 = vector.broadcast %160 : vector<1x256xf32> to vector<4x256xf32>
    %162 = arith.mulf %158, %161 : vector<4x256xf32>
    %c8_157 = arith.constant 8 : index
    %c0_158 = arith.constant 0 : index
    %c0_159 = arith.constant 0 : index
    %163 = vector.load %arg8[%c8_157, %c0_158, %c0_159] : memref<9x4x4xf32, #tpu.memory_space<vmem>>, vector<1x4x4xf32>
    %164 = vector.shape_cast %163 : vector<1x4x4xf32> to vector<4x4xf32>
    %cst_160 = arith.constant dense<0.000000e+00> : vector<4x256xf32>
    %165 = tpu.matmul %164, %162, %cst_160 {dimension_numbers = #tpu.dot_dimension_numbers<[1], [0], [0], [1], [0, 0, 1, 1], [], []>} : vector<4x4xf32>, vector<4x256xf32>, vector<4x256xf32> -> vector<4x256xf32>
    %166 = arith.addf %157, %165 : vector<4x256xf32>
    %c0_161 = arith.constant 0 : index
    %c0_162 = arith.constant 0 : index
    %167 = vector.load %arg9[%c0_161, %c0_162] : memref<4x1xf32, #tpu.memory_space<vmem>>, vector<4x1xf32>
    %168 = vector.broadcast %167 : vector<4x1xf32> to vector<4x256xf32>
    %169 = arith.mulf %166, %168 : vector<4x256xf32>
    %c0_163 = arith.constant 0 : index
    %c0_164 = arith.constant 0 : index
    %170 = vector.load %arg10[%c0_163, %c0_164] : memref<4x1xf32, #tpu.memory_space<vmem>>, vector<4x1xf32>
    %171 = vector.broadcast %170 : vector<4x1xf32> to vector<4x256xf32>
    %172 = arith.addf %169, %171 : vector<4x256xf32>
    %cst_165 = arith.constant 0.000000e+00 : f32
    %173 = vector.broadcast %cst_165 : f32 to vector<4x256xf32>
    %174 = arith.maximumf %172, %173 : vector<4x256xf32>
    %c0_166 = arith.constant 0 : index
    %c0_167 = arith.constant 0 : index
    %c0_168 = arith.constant 0 : index
    %175 = vector.load %arg12[%c0_166, %c0_167, %c0_168] : memref<1x4x256xf32, #tpu.memory_space<vmem>>, vector<1x4x256xf32>
    %176 = vector.shape_cast %175 : vector<1x4x256xf32> to vector<4x256xf32>
    %177 = vector.shape_cast %174 : vector<4x256xf32> to vector<1x4x256xf32>
    tpu.vector_store %arg12[%c0_166, %c0_167, %c0_168], %177 {strides = array<i32>} : memref<1x4x256xf32, #tpu.memory_space<vmem>>, vector<1x4x256xf32>,
    return
  }
  func.func @transform_0(%arg0: i32) -> (i32, i32, i32) {
    %c0_i32 = arith.constant 0 : i32
    %c0_i32_0 = arith.constant 0 : i32
    %c0_i32_1 = arith.constant 0 : i32
    return %arg0, %c0_i32, %c0_i32_0 : i32, i32, i32
  }
  func.func @transform_1(%arg0: i32) -> (i32, i32, i32) {
    %c0_i32 = arith.constant 0 : i32
    %c0_i32_0 = arith.constant 0 : i32
    %c0_i32_1 = arith.constant 0 : i32
    return %arg0, %c0_i32, %c0_i32_0 : i32, i32, i32
  }
  func.func @transform_2(%arg0: i32) -> (i32, i32) {
    %c0_i32 = arith.constant 0 : i32
    %c0_i32_0 = arith.constant 0 : i32
    %c0_i32_1 = arith.constant 0 : i32
    return %c0_i32, %c0_i32_0 : i32, i32
  }
  func.func @transform_3(%arg0: i32) -> (i32, i32) {
    %c0_i32 = arith.constant 0 : i32
    %c0_i32_0 = arith.constant 0 : i32
    %c0_i32_1 = arith.constant 0 : i32
    return %c0_i32, %c0_i32_0 : i32, i32
  }
  func.func @transform_4(%arg0: i32) -> (i32, i32, i32) {
    %c0_i32 = arith.constant 0 : i32
    %c0_i32_0 = arith.constant 0 : i32
    %c0_i32_1 = arith.constant 0 : i32
    %c0_i32_2 = arith.constant 0 : i32
    return %c0_i32, %c0_i32_0, %c0_i32_1 : i32, i32, i32
  }
  func.func @transform_5(%arg0: i32) -> (i32, i32) {
    %c0_i32 = arith.constant 0 : i32
    %c0_i32_0 = arith.constant 0 : i32
    %c0_i32_1 = arith.constant 0 : i32
    return %c0_i32, %c0_i32_0 : i32, i32
  }
  func.func @transform_6(%arg0: i32) -> (i32, i32) {
    %c0_i32 = arith.constant 0 : i32
    %c0_i32_0 = arith.constant 0 : i32
    %c0_i32_1 = arith.constant 0 : i32
    return %c0_i32, %c0_i32_0 : i32, i32
  }
  func.func @transform_7(%arg0: i32) -> (i32, i32, i32) {
    %c0_i32 = arith.constant 0 : i32
    %c0_i32_0 = arith.constant 0 : i32
    %c0_i32_1 = arith.constant 0 : i32
    %c0_i32_2 = arith.constant 0 : i32
    return %c0_i32, %c0_i32_0, %c0_i32_1 : i32, i32, i32
  }
  func.func @transform_8(%arg0: i32) -> (i32, i32) {
    %c0_i32 = arith.constant 0 : i32
    %c0_i32_0 = arith.constant 0 : i32
    %c0_i32_1 = arith.constant 0 : i32
    return %c0_i32, %c0_i32_0 : i32, i32
  }
  func.func @transform_9(%arg0: i32) -> (i32, i32) {
    %c0_i32 = arith.constant 0 : i32
    %c0_i32_0 = arith.constant 0 : i32
    %c0_i32_1 = arith.constant 0 : i32
    return %c0_i32, %c0_i32_0 : i32, i32
  }
  func.func @transform_10(%arg0: i32) -> (i32, i32, i32) {
    %c0_i32 = arith.constant 0 : i32
    %c0_i32_0 = arith.constant 0 : i32
    %c0_i32_1 = arith.constant 0 : i32
    %c0_i32_2 = arith.constant 0 : i32
    return %c0_i32, %c0_i32_0, %c0_i32_1 : i32, i32, i32
  }
  func.func @transform_11(%arg0: i32) -> (i32, i32, i32) {
    %c0_i32 = arith.constant 0 : i32
    %c0_i32_0 = arith.constant 0 : i32
    %c0_i32_1 = arith.constant 0 : i32
    return %arg0, %c0_i32, %c0_i32_0 : i32, i32, i32
  }
}

</mosaic_0001>

<llo_original>
// kernel: tpu_custom_call.1
$region0: #{tpu_custom_call.1}
  #allocation0 [shape = 'u32[]', space=smem, size = 0x4, offset = 0x4, fixed_abs, tag = 'smem constant byte address 0x4 - core index']
  #allocation1 [shape = 'u32[144,128]{1,0:T(1,128)}', space=vmem, size = 0x12000, scoped, tag = 'internal scratch']
  #allocation2 [shape = 'f32[8,512]{1,0:T(8,128)}', space=vmem, size = 0x4000, scoped, tag = 'scratch operand']
  #allocation3 [shape = 'f32[4,512]{1,0:T(4,128)}', space=vmem, size = 0x2000, scoped, tag = 'scratch operand']
  %s0 = inlined_call_operand.vmem [shape: f32[2,4,256], index: 0, kind: input, shape index: {}]
  %s1 = inlined_call_operand.vmem [shape: f32[2,4,64], index: 1, kind: input, shape index: {}]
  %s2 = inlined_call_operand.vmem [shape: f32[64,128], index: 2, kind: input, shape index: {}]
  %s3 = inlined_call_operand.hbm [shape: f32[128,256], index: 3, kind: input, shape index: {}]
  %s4 = inlined_call_operand.vmem [shape: f32[9,4,8], index: 4, kind: input, shape index: {}]
  %s5 = inlined_call_operand.vmem [shape: f32[4,1], index: 5, kind: input, shape index: {}]
  %s6 = inlined_call_operand.vmem [shape: f32[4,1], index: 6, kind: input, shape index: {}]
  %s7 = inlined_call_operand.vmem [shape: f32[9,4,4], index: 7, kind: input, shape index: {}]
  %s8 = inlined_call_operand.vmem [shape: f32[4,1], index: 8, kind: input, shape index: {}]
  %s9 = inlined_call_operand.vmem [shape: f32[4,1], index: 9, kind: input, shape index: {}]
  %s10 = inlined_call_operand.vmem [shape: f32[3,1,256], index: 10, kind: input, shape index: {}]
  %s11 = inlined_call_operand.hbm [shape: f32[2,4,256], index: 11, kind: output, shape index: {}]
  %s12 = sld [smem:[#allocation0]]
  $region81: #{tpu_custom_call.1} parent=0
    _
  %s14 = ssub.s32 1, %s12
  %s15 = scalar_select 0, %s14, %s12
  $region1: #{tpu_custom_call.1} parent=0
    #allocation4 [shape = 'u8[131072]{0}', space=vmem, size = 0x20000, scoped, tag = 'input window, operand 3, single buffered']
    #allocation5 [shape = 's32[2]{0}', space=sflag, size = 0x8, scoped, tag = 'scoped memory for tpu_custom_call.1']
    #allocation6 [shape = 's32[2]{0}', space=sflag, size = 0x8, scoped, tag = 'scoped memory for tpu_custom_call.1']
    #allocation7 [shape = 'u8[8192]{0}', space=vmem, size = 0x2000, scoped, tag = 'output window, operand 0']
    %16 = vsyncpa [#allocation5], 0
    %17 = vsyncpa [#allocation6], 0
    %s18 = scalar_lea.sflag [#allocation6], 1
    %19 = vsyncpa %s18, 0
    loop: start=0, step=1, limit=4
    $region2: #{tpu_custom_call.1} parent=1 // loop_pre_header
      _
    $region3: #{tpu_custom_call.1} parent=1 // loop_header
      %s21 = sphi 0, %s25
      %p22 = scmp.ge.s32.totalorder %s21, 4
      %s31 = sphi 0, %s33
      %s34 = sphi 0, %s31
      %s35 = sphi 0, %s34
      %s51 = sphi 0, %s35
      %s57 = sphi 0, %s59
      %s60 = sphi 0, %s57
      %s61 = sphi 0, %s60
      %s77 = sphi 0, %s61
      %s81 = sphi 0, %s81
      %s83 = sphi 0, %s81
      %s84 = sphi 0, %s83
      %s98 = sphi 0, %s84
      %s102 = sphi 0, %s102
      %s104 = sphi 0, %s102
      %s105 = sphi 0, %s104
      %s119 = sphi 0, %s105
      %s123 = sphi 0, %s123
      %s125 = sphi 0, %s123
      %s126 = sphi 0, %s125
      %s140 = sphi 0, %s126
      %s144 = sphi 0, %s144
      %s146 = sphi 0, %s144
      %s147 = sphi 0, %s146
      %s161 = sphi 0, %s147
      %s165 = sphi 0, %s165
      %s167 = sphi 0, %s165
      %s168 = sphi 0, %s167
      %s182 = sphi 0, %s168
      %s186 = sphi 0, %s186
      %s188 = sphi 0, %s186
      %s189 = sphi 0, %s188
      %s203 = sphi 0, %s189
      %s207 = sphi 0, %s207
      %s209 = sphi 0, %s207
      %s210 = sphi 0, %s209
      %s224 = sphi 0, %s210
      %s228 = sphi 0, %s228
      %s230 = sphi 0, %s228
      %s231 = sphi 0, %s230
      %s245 = sphi 0, %s231
      %s249 = sphi 0, %s249
      %s251 = sphi 0, %s249
      %s252 = sphi 0, %s251
      %s266 = sphi 0, %s252
      %s272 = sphi 0, %s274
      %s275 = sphi 0, %s272
      %s276 = sphi 0, %s275
      %s292 = sphi 0, %s276
    $region4: #{tpu_custom_call.1} parent=1 // loop_header_branch
      %24 = sbr.rel (%p22) target = $region8
    $region5: #{tpu_custom_call.1} parent=1 // loop_body
      %s26 = ssub.s32 %s21, 1
      %s27 = ssub.s32 %s21, 2
      %s28 = sadd.s32 %s21, 1
      %s29 = ssub.s32 %s21, %s28
      %p30 = scmp.eq.s32.totalorder %s29, 0
      %s32 = sadd.s32 %s31, 1
      %s33 = scalar_select %p30, %s31, %s32
      %p36 = pneg %p30
      %p37 = scmp.eq.s32.totalorder %s21, 1
      %p38 = por %p36, %p37
      %p39 = scmp.ne.s32.totalorder %s31, %s34
      %p40 = scmp.eq.s32.totalorder %s21, 0
      %p41 = por %p39, %p40
      %p42 = scmp.ne.s32.totalorder %s31, %s34
      %p43 = scmp.eq.s32.totalorder %s26, 1
      %p44 = por %p42, %p43
      %p45 = scmp.ne.s32.totalorder %s34, %s35
      %p46 = scmp.eq.s32.totalorder %s26, 0
      %p47 = por %p45, %p46
      %p48 = scmp.ne.s32.totalorder %s34, %s35
      %p49 = scmp.eq.s32.totalorder %s27, 1
      %p50 = por %p48, %p49
      %p52 = scmp.ne.s32.totalorder %s35, %s51
      %p53 = scmp.eq.s32.totalorder %s27, 0
      %p54 = por %p52, %p53
      %s55 = ssub.s32 %s21, %s28
      %p56 = scmp.eq.s32.totalorder %s55, 0
      %s58 = sadd.s32 %s57, 1
      %s59 = scalar_select %p56, %s57, %s58
      %p62 = pneg %p56
      %p63 = scmp.eq.s32.totalorder %s21, 1
      %p64 = por %p62, %p63
      %p65 = scmp.ne.s32.totalorder %s57, %s60
      %p66 = scmp.eq.s32.totalorder %s21, 0
      %p67 = por %p65, %p66
      %p68 = scmp.ne.s32.totalorder %s57, %s60
      %p69 = scmp.eq.s32.totalorder %s26, 1
      %p70 = por %p68, %p69
      %p71 = scmp.ne.s32.totalorder %s60, %s61
      %p72 = scmp.eq.s32.totalorder %s26, 0
      %p73 = por %p71, %p72
      %p74 = scmp.ne.s32.totalorder %s60, %s61
      %p75 = scmp.eq.s32.totalorder %s27, 1
      %p76 = por %p74, %p75
      %p78 = scmp.ne.s32.totalorder %s61, %s77
      %p79 = scmp.eq.s32.totalorder %s27, 0
      %p80 = por %p78, %p79
      %s82 = sadd.s32 %s81, 1
      %p85 = scmp.eq.s32.totalorder %s21, 1
      %p86 = scmp.ne.s32.totalorder %s81, %s83
      %p87 = scmp.eq.s32.totalorder %s21, 0
      %p88 = por %p86, %p87
      %p89 = scmp.ne.s32.totalorder %s81, %s83
      %p90 = scmp.eq.s32.totalorder %s26, 1
      %p91 = por %p89, %p90
      %p92 = scmp.ne.s32.totalorder %s83, %s84
      %p93 = scmp.eq.s32.totalorder %s26, 0
      %p94 = por %p92, %p93
      %p95 = scmp.ne.s32.totalorder %s83, %s84
      %p96 = scmp.eq.s32.totalorder %s27, 1
      %p97 = por %p95, %p96
      %p99 = scmp.ne.s32.totalorder %s84, %s98
      %p100 = scmp.eq.s32.totalorder %s27, 0
      %p101 = por %p99, %p100
      %s103 = sadd.s32 %s102, 1
      %p106 = scmp.eq.s32.totalorder %s21, 1
      %p107 = scmp.ne.s32.totalorder %s102, %s104
      %p108 = scmp.eq.s32.totalorder %s21, 0
      %p109 = por %p107, %p108
      %p110 = scmp.ne.s32.totalorder %s102, %s104
      %p111 = scmp.eq.s32.totalorder %s26, 1
      %p112 = por %p110, %p111
      %p113 = scmp.ne.s32.totalorder %s104, %s105
      %p114 = scmp.eq.s32.totalorder %s26, 0
      %p115 = por %p113, %p114
      %p116 = scmp.ne.s32.totalorder %s104, %s105
      %p117 = scmp.eq.s32.totalorder %s27, 1
      %p118 = por %p116, %p117
      %p120 = scmp.ne.s32.totalorder %s105, %s119
      %p121 = scmp.eq.s32.totalorder %s27, 0
      %p122 = por %p120, %p121
      %s124 = sadd.s32 %s123, 1
      %p127 = scmp.eq.s32.totalorder %s21, 1
      %p128 = scmp.ne.s32.totalorder %s123, %s125
      %p129 = scmp.eq.s32.totalorder %s21, 0
      %p130 = por %p128, %p129
      %p131 = scmp.ne.s32.totalorder %s123, %s125
      %p132 = scmp.eq.s32.totalorder %s26, 1
      %p133 = por %p131, %p132
      %p134 = scmp.ne.s32.totalorder %s125, %s126
      %p135 = scmp.eq.s32.totalorder %s26, 0
      %p136 = por %p134, %p135
      %p137 = scmp.ne.s32.totalorder %s125, %s126
      %p138 = scmp.eq.s32.totalorder %s27, 1
      %p139 = por %p137, %p138
      %p141 = scmp.ne.s32.totalorder %s126, %s140
      %p142 = scmp.eq.s32.totalorder %s27, 0
      %p143 = por %p141, %p142
      %s145 = sadd.s32 %s144, 1
      %p148 = scmp.eq.s32.totalorder %s21, 1
      %p149 = scmp.ne.s32.totalorder %s144, %s146
      %p150 = scmp.eq.s32.totalorder %s21, 0
      %p151 = por %p149, %p150
      %p152 = scmp.ne.s32.totalorder %s144, %s146
      %p153 = scmp.eq.s32.totalorder %s26, 1
      %p154 = por %p152, %p153
      %p155 = scmp.ne.s32.totalorder %s146, %s147
      %p156 = scmp.eq.s32.totalorder %s26, 0
      %p157 = por %p155, %p156
      %p158 = scmp.ne.s32.totalorder %s146, %s147
      %p159 = scmp.eq.s32.totalorder %s27, 1
      %p160 = por %p158, %p159
      %p162 = scmp.ne.s32.totalorder %s147, %s161
      %p163 = scmp.eq.s32.totalorder %s27, 0
      %p164 = por %p162, %p163
      %s166 = sadd.s32 %s165, 1
      %p169 = scmp.eq.s32.totalorder %s21, 1
      %p170 = scmp.ne.s32.totalorder %s165, %s167
      %p171 = scmp.eq.s32.totalorder %s21, 0
      %p172 = por %p170, %p171
      %p173 = scmp.ne.s32.totalorder %s165, %s167
      %p174 = scmp.eq.s32.totalorder %s26, 1
      %p175 = por %p173, %p174
      %p176 = scmp.ne.s32.totalorder %s167, %s168
      %p177 = scmp.eq.s32.totalorder %s26, 0
      %p178 = por %p176, %p177
      %p179 = scmp.ne.s32.totalorder %s167, %s168
      %p180 = scmp.eq.s32.totalorder %s27, 1
      %p181 = por %p179, %p180
      %p183 = scmp.ne.s32.totalorder %s168, %s182
      %p184 = scmp.eq.s32.totalorder %s27, 0
      %p185 = por %p183, %p184
      %s187 = sadd.s32 %s186, 1
      %p190 = scmp.eq.s32.totalorder %s21, 1
      %p191 = scmp.ne.s32.totalorder %s186, %s188
      %p192 = scmp.eq.s32.totalorder %s21, 0
      %p193 = por %p191, %p192
      %p194 = scmp.ne.s32.totalorder %s186, %s188
      %p195 = scmp.eq.s32.totalorder %s26, 1
      %p196 = por %p194, %p195
      %p197 = scmp.ne.s32.totalorder %s188, %s189
      %p198 = scmp.eq.s32.totalorder %s26, 0
      %p199 = por %p197, %p198
      %p200 = scmp.ne.s32.totalorder %s188, %s189
      %p201 = scmp.eq.s32.totalorder %s27, 1
      %p202 = por %p200, %p201
      %p204 = scmp.ne.s32.totalorder %s189, %s203
      %p205 = scmp.eq.s32.totalorder %s27, 0
      %p206 = por %p204, %p205
      %s208 = sadd.s32 %s207, 1
      %p211 = scmp.eq.s32.totalorder %s21, 1
      %p212 = scmp.ne.s32.totalorder %s207, %s209
      %p213 = scmp.eq.s32.totalorder %s21, 0
      %p214 = por %p212, %p213
      %p215 = scmp.ne.s32.totalorder %s207, %s209
      %p216 = scmp.eq.s32.totalorder %s26, 1
      %p217 = por %p215, %p216
      %p218 = scmp.ne.s32.totalorder %s209, %s210
      %p219 = scmp.eq.s32.totalorder %s26, 0
      %p220 = por %p218, %p219
      %p221 = scmp.ne.s32.totalorder %s209, %s210
      %p222 = scmp.eq.s32.totalorder %s27, 1
      %p223 = por %p221, %p222
      %p225 = scmp.ne.s32.totalorder %s210, %s224
      %p226 = scmp.eq.s32.totalorder %s27, 0
      %p227 = por %p225, %p226
      %s229 = sadd.s32 %s228, 1
      %p232 = scmp.eq.s32.totalorder %s21, 1
      %p233 = scmp.ne.s32.totalorder %s228, %s230
      %p234 = scmp.eq.s32.totalorder %s21, 0
      %p235 = por %p233, %p234
      %p236 = scmp.ne.s32.totalorder %s228, %s230
      %p237 = scmp.eq.s32.totalorder %s26, 1
      %p238 = por %p236, %p237
      %p239 = scmp.ne.s32.totalorder %s230, %s231
      %p240 = scmp.eq.s32.totalorder %s26, 0
      %p241 = por %p239, %p240
      %p242 = scmp.ne.s32.totalorder %s230, %s231
      %p243 = scmp.eq.s32.totalorder %s27, 1
      %p244 = por %p242, %p243
      %p246 = scmp.ne.s32.totalorder %s231, %s245
      %p247 = scmp.eq.s32.totalorder %s27, 0
      %p248 = por %p246, %p247
      %s250 = sadd.s32 %s249, 1
      %p253 = scmp.eq.s32.totalorder %s21, 1
      %p254 = scmp.ne.s32.totalorder %s249, %s251
      %p255 = scmp.eq.s32.totalorder %s21, 0
      %p256 = por %p254, %p255
      %p257 = scmp.ne.s32.totalorder %s249, %s251
      %p258 = scmp.eq.s32.totalorder %s26, 1
      %p259 = por %p257, %p258
      %p260 = scmp.ne.s32.totalorder %s251, %s252
      %p261 = scmp.eq.s32.totalorder %s26, 0
      %p262 = por %p260, %p261
      %p263 = scmp.ne.s32.totalorder %s251, %s252
      %p264 = scmp.eq.s32.totalorder %s27, 1
      %p265 = por %p263, %p264
      %p267 = scmp.ne.s32.totalorder %s252, %s266
      %p268 = scmp.eq.s32.totalorder %s27, 0
      %p269 = por %p267, %p268
      %s270 = ssub.s32 %s21, %s28
      %p271 = scmp.eq.s32.totalorder %s270, 0
      %s273 = sadd.s32 %s272, 1
      %s274 = scalar_select %p271, %s272, %s273
      %p277 = pneg %p271
      %p278 = scmp.eq.s32.totalorder %s21, 1
      %p279 = por %p277, %p278
      %p280 = scmp.ne.s32.totalorder %s272, %s275
      %p281 = scmp.eq.s32.totalorder %s21, 0
      %p282 = por %p280, %p281
      %p283 = scmp.ne.s32.totalorder %s272, %s275
      %p284 = scmp.eq.s32.totalorder %s26, 1
      %p285 = por %p283, %p284
      %p286 = scmp.ne.s32.totalorder %s275, %s276
      %p287 = scmp.eq.s32.totalorder %s26, 0
      %p288 = por %p286, %p287
      %p289 = scmp.ne.s32.totalorder %s275, %s276
      %p290 = scmp.eq.s32.totalorder %s27, 1
      %p291 = por %p289, %p290
      %p293 = scmp.ne.s32.totalorder %s276, %s292
      %p294 = scmp.eq.s32.totalorder %s27, 0
      %p295 = por %p293, %p294
      %p296 = scmp.le.s32.totalorder 1, %s21
      %p297 = scmp.lt.s32.totalorder %s21, 3
      %p298 = pnand %p296, %p297
      %p299 = pneg %p298
      // Predicated region
      $region9: #{tpu_custom_call.1} parent=5 // pred_check
        _
      $region10: #{tpu_custom_call.1} parent=5 // pred_check_branch
        %301 = sbr.rel (%p298) target = $region12
      $region11: #{tpu_custom_call.1} parent=5 // pred_region
        %s302 = ssub.s32 %s21, 1
        // Predicated region
        $region13: #{tpu_custom_call.1} parent=11 // pred_check
          %p303 = pneg %p94
        $region14: #{tpu_custom_call.1} parent=11 // pred_check_branch
          %305 = sbr.rel (%p303) target = $region16
        $region15: #{tpu_custom_call.1} parent=11 // pred_region
          _
        $region16: #{tpu_custom_call.1} parent=11 // pred_fallthru
          _
        // Predicated region
        $region17: #{tpu_custom_call.1} parent=11 // pred_check
          %p306 = pneg %p115
        $region18: #{tpu_custom_call.1} parent=11 // pred_check_branch
          %308 = sbr.rel (%p306) target = $region20
        $region19: #{tpu_custom_call.1} parent=11 // pred_region
          %s310 = ssub.s32 4096, 4096
          %311 = vsyncadd [#allocation5], %s310
          %s312 = sshll.u32 [#allocation4], 4
          %s313 = int_to_ptr.vmem [resolvable:$true] %s312
          %318 = dma.hbm_to_vmem [thread:$0]  %s3, 4096, %s313, [#allocation5], 256, 256, 16
        $region20: #{tpu_custom_call.1} parent=11 // pred_fallthru
          _
        // Predicated region
        $region21: #{tpu_custom_call.1} parent=11 // pred_check
          %p319 = pneg %p136
        $region22: #{tpu_custom_call.1} parent=11 // pred_check_branch
          %321 = sbr.rel (%p319) target = $region24
        $region23: #{tpu_custom_call.1} parent=11 // pred_region
          _
        $region24: #{tpu_custom_call.1} parent=11 // pred_fallthru
          _
        // Predicated region
        $region25: #{tpu_custom_call.1} parent=11 // pred_check
          %p322 = pneg %p157
        $region26: #{tpu_custom_call.1} parent=11 // pred_check_branch
          %324 = sbr.rel (%p322) target = $region28
        $region27: #{tpu_custom_call.1} parent=11 // pred_region
          _
        $region28: #{tpu_custom_call.1} parent=11 // pred_fallthru
          _
        // Predicated region
        $region29: #{tpu_custom_call.1} parent=11 // pred_check
          %p325 = pneg %p178
        $region30: #{tpu_custom_call.1} parent=11 // pred_check_branch
          %327 = sbr.rel (%p325) target = $region32
        $region31: #{tpu_custom_call.1} parent=11 // pred_region
          _
        $region32: #{tpu_custom_call.1} parent=11 // pred_fallthru
          _
        // Predicated region
        $region33: #{tpu_custom_call.1} parent=11 // pred_check
          %p328 = pneg %p199
        $region34: #{tpu_custom_call.1} parent=11 // pred_check_branch
          %330 = sbr.rel (%p328) target = $region36
        $region35: #{tpu_custom_call.1} parent=11 // pred_region
          _
        $region36: #{tpu_custom_call.1} parent=11 // pred_fallthru
          _
        // Predicated region
        $region37: #{tpu_custom_call.1} parent=11 // pred_check
          %p331 = pneg %p220
        $region38: #{tpu_custom_call.1} parent=11 // pred_check_branch
          %333 = sbr.rel (%p331) target = $region40
        $region39: #{tpu_custom_call.1} parent=11 // pred_region
          _
        $region40: #{tpu_custom_call.1} parent=11 // pred_fallthru
          _
        // Predicated region
        $region41: #{tpu_custom_call.1} parent=11 // pred_check
          %p334 = pneg %p241
        $region42: #{tpu_custom_call.1} parent=11 // pred_check_branch
          %336 = sbr.rel (%p334) target = $region44
        $region43: #{tpu_custom_call.1} parent=11 // pred_region
          _
        $region44: #{tpu_custom_call.1} parent=11 // pred_fallthru
          _
        // Predicated region
        $region45: #{tpu_custom_call.1} parent=11 // pred_check
          %p337 = pneg %p262
        $region46: #{tpu_custom_call.1} parent=11 // pred_check_branch
          %339 = sbr.rel (%p337) target = $region48
        $region47: #{tpu_custom_call.1} parent=11 // pred_region
          _
        $region48: #{tpu_custom_call.1} parent=11 // pred_fallthru
          _
      $region12: #{tpu_custom_call.1} parent=5 // pred_fallthru
        _
      %p340 = scmp.lt.s32.totalorder %s21, 2
      // Predicated region
      $region49: #{tpu_custom_call.1} parent=5 // pred_check
        %p341 = pneg %p340
      $region50: #{tpu_custom_call.1} parent=5 // pred_check_branch
        %343 = sbr.rel (%p341) target = $region52
      $region51: #{tpu_custom_call.1} parent=5 // pred_region
        // Predicated region
        $region53: #{tpu_custom_call.1} parent=51 // pred_check
          %p344 = pneg %p41
        $region54: #{tpu_custom_call.1} parent=51 // pred_check_branch
          %346 = sbr.rel (%p344) target = $region56
        $region55: #{tpu_custom_call.1} parent=51 // pred_region
          %p347 = scmp.lt.s32.totalorder %s21, 1
          %s348 = scalar_select %p347, %s21, 1
          %s349 = smul.addr %s348, 2
          %s350 = smul.addr %s349, 4
          %s351 = scalar_lea.vmem %s0, %s350
        $region56: #{tpu_custom_call.1} parent=51 // pred_fallthru
          _
        // Predicated region
        $region57: #{tpu_custom_call.1} parent=51 // pred_check
          %p352 = pneg %p67
        $region58: #{tpu_custom_call.1} parent=51 // pred_check_branch
          %354 = sbr.rel (%p352) target = $region60
        $region59: #{tpu_custom_call.1} parent=51 // pred_region
          %p355 = scmp.lt.s32.totalorder %s21, 1
          %s356 = scalar_select %p355, %s21, 1
          %s357 = smul.addr %s356, 4
          %s358 = scalar_lea.vmem %s1, %s357
        $region60: #{tpu_custom_call.1} parent=51 // pred_fallthru
          _
      $region52: #{tpu_custom_call.1} parent=5 // pred_fallthru
        _
      %p359 = scmp.le.s32.totalorder 1, %s21
      %p360 = scmp.lt.s32.totalorder %s21, 3
      %p361 = pnand %p359, %p360
      %p362 = pneg %p361
      // Predicated region
      $region61: #{tpu_custom_call.1} parent=5 // pred_check
        _
      $region62: #{tpu_custom_call.1} parent=5 // pred_check_branch
        %364 = sbr.rel (%p361) target = $region64
      $region63: #{tpu_custom_call.1} parent=5 // pred_region
        %s365 = ssub.s32 %s21, 1
        // Predicated region
        $region65: #{tpu_custom_call.1} parent=63 // pred_check
          %p366 = pneg %p115
        $region66: #{tpu_custom_call.1} parent=63 // pred_check_branch
          %368 = sbr.rel (%p366) target = $region68
        $region67: #{tpu_custom_call.1} parent=63 // pred_region
          %369 = dma.done [#allocation5], 4096
        $region68: #{tpu_custom_call.1} parent=63 // pred_fallthru
          _
        %p370 = scmp.lt.s32.totalorder %s26, 1
        %s371 = scalar_select %p370, %s26, 1
        %s372 = smul.addr %s371, 2
        %s373 = smul.addr %s372, 4
        %s374 = scalar_lea.vmem %s0, %s373
        %p375 = pneg %p47
        %p376 = pneg %p44
        %p377 = scmp.lt.s32.totalorder %s26, 1
        %s378 = scalar_select %p377, %s26, 1
        %s379 = smul.addr %s378, 4
        %s380 = scalar_lea.vmem %s1, %s379
        %p381 = pneg %p73
        %p382 = pneg %p70
        %p383 = pneg %p94
        %p384 = pneg %p91
        %p385 = pneg %p115
        %p386 = pneg %p112
        %p387 = pneg %p136
        %p388 = pneg %p133
        %p389 = pneg %p157
        %p390 = pneg %p154
        %p391 = pneg %p178
        %p392 = pneg %p175
        %p393 = pneg %p199
        %p394 = pneg %p196
        %p395 = pneg %p220
        %p396 = pneg %p217
        %p397 = pneg %p241
        %p398 = pneg %p238
        %p399 = pneg %p262
        %p400 = pneg %p259
        %p401 = pneg %p288
        %p402 = pneg %p285
        %s403 = sand.u32 %s275, 1
        %s404 = scalar_lea.sflag [#allocation6], %s403
        %s405 = sand.u32 %s275, 1
        %s406 = smul.addr %s405, 8
        %s407 = scalar_lea.vmem [#allocation7], %s406
        %p408 = scmp.lt.s32.totalorder %s26, 1
        %s409 = scalar_select %p408, %s26, 1
        %s410 = smul.addr %s409, 2
        %s411 = smul.addr %s410, 4
        %s412 = scalar_lea.vmem %s0, %s411
        %p413 = scmp.lt.s32.totalorder %s26, 1
        %s414 = scalar_select %p413, %s26, 1
        %s415 = smul.addr %s414, 4
        %s416 = scalar_lea.vmem %s1, %s415
        %417 = vst [vmem:[#allocation2] sm:$0xff] 0.0
        %418 = vst [vmem:[#allocation2 + $0x18] sm:$0xff] 0.0
        %419 = vst [vmem:[#allocation3] sm:$0xf] 0.0
        %420 = vst [vmem:[#allocation3 + $0xc] sm:$0xf] 0.0
        %v421 = vld [vmem:[%s416] sm:$0xf]
        %v422 = vld [vmem:[%s2] sm:$0xff]
        %v423 = vld [vmem:[%s2 + $0x8] sm:$0xff]
        %v424 = vld [vmem:[%s2 + $0x10] sm:$0xff]
        %v425 = vld [vmem:[%s2 + $0x18] sm:$0xff]
        %v426 = vld [vmem:[%s2 + $0x20] sm:$0xff]
        %v427 = vld [vmem:[%s2 + $0x28] sm:$0xff]
        %v428 = vld [vmem:[%s2 + $0x30] sm:$0xff]
        %v429 = vld [vmem:[%s2 + $0x38] sm:$0xff]
        %vm430 = vcmask 523264
        %v432 = vsel %vm430, %v421, 0
        %434 = vmatprep.subr.mxu0 0.0
        %435 = vmatpush1.msra.mxu0 %v422
        %436 = vmatprep.subr.mxu0 0.0
        %437 = vmatpush1.msra.mxu0 %v423
        %438 = vmatprep.subr.mxu0 0.0
        %439 = vmatpush1.msra.mxu0 %v424
        %440 = vmatprep.subr.mxu0 0.0
        %441 = vmatpush1.msra.mxu0 %v425
        %442 = vmatprep.subr.mxu0 0.0
        %443 = vmatpush1.msra.mxu0 %v426
        %444 = vmatprep.subr.mxu0 0.0
        %445 = vmatpush1.msra.mxu0 %v427
        %446 = vmatprep.subr.mxu0 0.0
        %447 = vmatpush1.msra.mxu0 %v428
        %448 = vmatprep.subr.mxu0 0.0
        %449 = vmatpush1.msra.mxu0 %v429
        %450 = vmatprep.subr.mxu0 0.0
        %451 = vmatpush1.msra.mxu0 0.0
        %452 = vmatprep.subr.mxu0 0.0
        %453 = vmatpush1.msra.mxu0 0.0
        %454 = vmatprep.subr.mxu0 0.0
        %455 = vmatpush1.msra.mxu0 0.0
        %456 = vmatprep.subr.mxu0 0.0
        %457 = vmatpush1.msra.mxu0 0.0
        %458 = vmatprep.subr.mxu0 0.0
        %459 = vmatpush1.msra.mxu0 0.0
        %460 = vmatprep.subr.mxu0 0.0
        %461 = vmatpush1.msra.mxu0 0.0
        %462 = vmatprep.subr.mxu0 0.0
        %463 = vmatpush1.msra.mxu0 0.0
        %464 = vmatprep.subr.mxu0 0.0
        %465 = vmatpush1.msra.mxu0 0.0
        %466 = vmatprep.subr.mxu0 0.0
        %467 = vmatpush1.msra.mxu0 0.0
        %468 = vmatprep.subr.mxu0 0.0
        %469 = vmatpush1.msra.mxu0 0.0
        %470 = vmatprep.subr.mxu0 0.0
        %471 = vmatpush1.msra.mxu0 0.0
        %472 = vmatprep.subr.mxu0 0.0
        %473 = vmatpush1.msra.mxu0 0.0
        %474 = vmatprep.subr.mxu0 0.0
        %475 = vmatpush1.msra.mxu0 0.0
        %476 = vmatprep.subr.mxu0 0.0
        %477 = vmatpush1.msra.mxu0 0.0
        %478 = vmatprep.subr.mxu0 0.0
        %479 = vmatpush1.msra.mxu0 0.0
        %480 = vmatprep.subr.mxu0 0.0
        %481 = vmatpush1.msra.mxu0 0.0
        %482 = vmatprep.subr.mxu0 0.0
        %483 = vmatpush1.msra.mxu0 0.0
        %484 = vmatprep.subr.mxu0 0.0
        %485 = vmatpush1.msra.mxu0 0.0
        %486 = vmatprep.subr.mxu0 0.0
        %487 = vmatpush1.msra.mxu0 0.0
        %488 = vmatprep.subr.mxu0 0.0
        %489 = vmatpush1.msra.mxu0 0.0
        %490 = vmatprep.subr.mxu0 0.0
        %491 = vmatpush1.msra.mxu0 0.0
        %492 = vmatprep.subr.mxu0 0.0
        %493 = vmatpush1.msra.mxu0 0.0
        %494 = vmatprep.subr.mxu0 0.0
        %495 = vmatpush1.msra.mxu0 0.0
        %496 = vmatprep.subr.mxu0 0.0
        %497 = vmatpush1.msra.mxu0 0.0
        %498 = vmatprep.mubr.f32.mxu0 0.0
        %499 = vmatmul.mubr.f32.gmra.mrb[0].mxu0 %v432
        %v500 = vpop.f32.mrb[0].mxu0
        %v501 = vadd.f32 0.0, %v500
        %v502 = vpop.f32.mrb[0].mxu0
        %503 = vdwg.mxu0
        %v504 = vld [vmem:[#allocation4] sm:$0xff]
        %v505 = vld [vmem:[#allocation4 + $0x8] sm:$0xff]
        %v506 = vld [vmem:[#allocation4 + $0x10] sm:$0xff]
        %v507 = vld [vmem:[#allocation4 + $0x18] sm:$0xff]
        %v508 = vld [vmem:[#allocation4 + $0x20] sm:$0xff]
        %v509 = vld [vmem:[#allocation4 + $0x28] sm:$0xff]
        %v510 = vld [vmem:[#allocation4 + $0x30] sm:$0xff]
        %v511 = vld [vmem:[#allocation4 + $0x38] sm:$0xff]
        %v512 = vld [vmem:[#allocation4 + $0x40] sm:$0xff]
        %v513 = vld [vmem:[#allocation4 + $0x48] sm:$0xff]
        %v514 = vld [vmem:[#allocation4 + $0x50] sm:$0xff]
        %v515 = vld [vmem:[#allocation4 + $0x58] sm:$0xff]
        %v516 = vld [vmem:[#allocation4 + $0x60] sm:$0xff]
        %v517 = vld [vmem:[#allocation4 + $0x68] sm:$0xff]
        %v518 = vld [vmem:[#allocation4 + $0x70] sm:$0xff]
        %v519 = vld [vmem:[#allocation4 + $0x78] sm:$0xff]
        %v520 = vld [vmem:[#allocation4 + $0x80] sm:$0xff]
        %v521 = vld [vmem:[#allocation4 + $0x88] sm:$0xff]
        %v522 = vld [vmem:[#allocation4 + $0x90] sm:$0xff]
        %v523 = vld [vmem:[#allocation4 + $0x98] sm:$0xff]
        %v524 = vld [vmem:[#allocation4 + $0xa0] sm:$0xff]
        %v525 = vld [vmem:[#allocation4 + $0xa8] sm:$0xff]
        %v526 = vld [vmem:[#allocation4 + $0xb0] sm:$0xff]
        %v527 = vld [vmem:[#allocation4 + $0xb8] sm:$0xff]
        %v528 = vld [vmem:[#allocation4 + $0xc0] sm:$0xff]
        %v529 = vld [vmem:[#allocation4 + $0xc8] sm:$0xff]
        %v530 = vld [vmem:[#allocation4 + $0xd0] sm:$0xff]
        %v531 = vld [vmem:[#allocation4 + $0xd8] sm:$0xff]
        %v532 = vld [vmem:[#allocation4 + $0xe0] sm:$0xff]
        %v533 = vld [vmem:[#allocation4 + $0xe8] sm:$0xff]
        %v534 = vld [vmem:[#allocation4 + $0xf0] sm:$0xff]
        %v535 = vld [vmem:[#allocation4 + $0xf8] sm:$0xff]
        %536 = vmatprep.subr.mxu0 %v505
        %537 = vmatpush1.msra.mxu0 %v504
        %538 = vmatprep.subr.mxu0 %v507
        %539 = vmatpush1.msra.mxu0 %v506
        %540 = vmatprep.subr.mxu0 %v509
        %541 = vmatpush1.msra.mxu0 %v508
        %542 = vmatprep.subr.mxu0 %v511
        %543 = vmatpush1.msra.mxu0 %v510
        %544 = vmatprep.subr.mxu0 %v513
        %545 = vmatpush1.msra.mxu0 %v512
        %546 = vmatprep.subr.mxu0 %v515
        %547 = vmatpush1.msra.mxu0 %v514
        %548 = vmatprep.subr.mxu0 %v517
        %549 = vmatpush1.msra.mxu0 %v516
        %550 = vmatprep.subr.mxu0 %v519
        %551 = vmatpush1.msra.mxu0 %v518
        %552 = vmatprep.subr.mxu0 %v521
        %553 = vmatpush1.msra.mxu0 %v520
        %554 = vmatprep.subr.mxu0 %v523
        %555 = vmatpush1.msra.mxu0 %v522
        %556 = vmatprep.subr.mxu0 %v525
        %557 = vmatpush1.msra.mxu0 %v524
        %558 = vmatprep.subr.mxu0 %v527
        %559 = vmatpush1.msra.mxu0 %v526
        %560 = vmatprep.subr.mxu0 %v529
        %561 = vmatpush1.msra.mxu0 %v528
        %562 = vmatprep.subr.mxu0 %v531
        %563 = vmatpush1.msra.mxu0 %v530
        %564 = vmatprep.subr.mxu0 %v533
        %565 = vmatpush1.msra.mxu0 %v532
        %566 = vmatprep.subr.mxu0 %v535
        %567 = vmatpush1.msra.mxu0 %v534
        %568 = vmatprep.subr.mxu0 0.0
        %569 = vmatpush1.msra.mxu0 0.0
        %570 = vmatprep.subr.mxu0 0.0
        %571 = vmatpush1.msra.mxu0 0.0
        %572 = vmatprep.subr.mxu0 0.0
        %573 = vmatpush1.msra.mxu0 0.0
        %574 = vmatprep.subr.mxu0 0.0
        %575 = vmatpush1.msra.mxu0 0.0
        %576 = vmatprep.subr.mxu0 0.0
        %577 = vmatpush1.msra.mxu0 0.0
        %578 = vmatprep.subr.mxu0 0.0
        %579 = vmatpush1.msra.mxu0 0.0
        %580 = vmatprep.subr.mxu0 0.0
        %581 = vmatpush1.msra.mxu0 0.0
        %582 = vmatprep.subr.mxu0 0.0
        %583 = vmatpush1.msra.mxu0 0.0
        %584 = vmatprep.subr.mxu0 0.0
        %585 = vmatpush1.msra.mxu0 0.0
        %586 = vmatprep.subr.mxu0 0.0
        %587 = vmatpush1.msra.mxu0 0.0
        %588 = vmatprep.subr.mxu0 0.0
        %589 = vmatpush1.msra.mxu0 0.0
        %590 = vmatprep.subr.mxu0 0.0
        %591 = vmatpush1.msra.mxu0 0.0
        %592 = vmatprep.subr.mxu0 0.0
        %593 = vmatpush1.msra.mxu0 0.0
        %594 = vmatprep.subr.mxu0 0.0
        %595 = vmatpush1.msra.mxu0 0.0
        %596 = vmatprep.subr.mxu0 0.0
        %597 = vmatpush1.msra.mxu0 0.0
        %598 = vmatprep.subr.mxu0 0.0
        %599 = vmatpush1.msra.mxu0 0.0
        %600 = vmatprep.mubr.f32.mxu0 0.0
        %601 = vmatmul.mubr.f32.gmra.mrb[0].mxu0 %v501
        %v602 = vpop.f32.mrb[0].mxu0
        %v603 = vadd.f32 0.0, %v602
        %v604 = vpop.f32.mrb[0].mxu0
        %v605 = vadd.f32 0.0, %v604
        %606 = vdwg.mxu0
        %v607 = vld [vmem:[%s412] sm:$0xff]
        %v609 = vcombine.high %v607, %v607
        %611 = vst [vmem:[#allocation2 + $0x8] sm:$0xf] %v607
        %612 = vst [vmem:[#allocation2 + $0x10] sm:$0xf] %v609
        %v615 = vrot.slane %v603, 4
        %v616 = vrot.slane %v605, 4
        %619 = vst [vmem:[#allocation2 + $0x8] sm:$0xf0] %v615
        %620 = vst [vmem:[#allocation2 + $0x10] sm:$0xf0] %v616
        %v621 = vld [vmem:[#allocation2] sm:$0xff]
        %v622 = vld [vmem:[#allocation2 + $0x8] sm:$0xff]
        %v623 = vld [vmem:[#allocation2 + $0x10] sm:$0xff]
        %v624 = vld [vmem:[%s10] sm:$0x3]
        %v626 = vlaneseq
        %v627 = vshrl.u32 %v626, 7
        %v628 = vsub.s32 0, %v627
        %v629 = vrot.slane %v624, %v628
        %v630 = vlaneseq
        %v631 = vshrl.u32 %v630, 7
        %v632 = vsub.s32 1, %v631
        %v633 = vrot.slane %v624, %v632
        %634 = vrot.lane.b32.xlu0 %v629, 111
        %v635 = vpop.permute.xlu0 %634
        %636 = vrot.lane.b32.xlu0 %v633, 111
        %v637 = vpop.permute.xlu0 %636
        %vm638 = vcmask 908288
        %v639 = vsel %vm638, %v635, %v637
        %v643 = vmul.f32 %v621, %v635
        %v644 = vmul.f32 %v622, %v639
        %v645 = vmul.f32 %v623, %v637
        %v646 = vld [vmem:[%s4] sm:$0xf]
        %s647 = scalar_lea.vmem %s4, 4
        %v648 = vld [vmem:[%s647] sm:$0xf]
        %652 = vrot.lane.b32.xlu0 %v621, 16
        %v653 = vpop.permute.xlu0 %652
        %654 = vrot.lane.b32.xlu0 %v622, 16
        %v655 = vpop.permute.xlu0 %654
        %656 = vrot.lane.b32.xlu0 %v623, 16
        %v657 = vpop.permute.xlu0 %656
        %vm658 = vcmask 130048
        %v659 = vsel %vm658, %v653, %v655
        %v660 = vsel %vm658, %v655, %v657
        %vm663 = vcmask 64512
        %v665 = vsel %vm663, %v648, 0
        %667 = vmatprep.subr.mxu0 %v660
        %668 = vmatpush1.msra.mxu0 %v659
        %669 = vmatprep.subr.mxu0 0.0
        %670 = vmatpush1.msra.mxu0 0.0
        %671 = vmatprep.subr.mxu0 0.0
        %672 = vmatpush1.msra.mxu0 0.0
        %673 = vmatprep.subr.mxu0 0.0
        %674 = vmatpush1.msra.mxu0 0.0
        %675 = vmatprep.subr.mxu0 0.0
        %676 = vmatpush1.msra.mxu0 0.0
        %677 = vmatprep.subr.mxu0 0.0
        %678 = vmatpush1.msra.mxu0 0.0
        %679 = vmatprep.subr.mxu0 0.0
        %680 = vmatpush1.msra.mxu0 0.0
        %681 = vmatprep.subr.mxu0 0.0
        %682 = vmatpush1.msra.mxu0 0.0
        %683 = vmatprep.subr.mxu0 0.0
        %684 = vmatpush1.msra.mxu0 0.0
        %685 = vmatprep.subr.mxu0 0.0
        %686 = vmatpush1.msra.mxu0 0.0
        %687 = vmatprep.subr.mxu0 0.0
        %688 = vmatpush1.msra.mxu0 0.0
        %689 = vmatprep.subr.mxu0 0.0
        %690 = vmatpush1.msra.mxu0 0.0
        %691 = vmatprep.subr.mxu0 0.0
        %692 = vmatpush1.msra.mxu0 0.0
        %693 = vmatprep.subr.mxu0 0.0
        %694 = vmatpush1.msra.mxu0 0.0
        %695 = vmatprep.subr.mxu0 0.0
        %696 = vmatpush1.msra.mxu0 0.0
        %697 = vmatprep.subr.mxu0 0.0
        %698 = vmatpush1.msra.mxu0 0.0
        %699 = vmatprep.subr.mxu0 0.0
        %700 = vmatpush1.msra.mxu0 0.0
        %701 = vmatprep.subr.mxu0 0.0
        %702 = vmatpush1.msra.mxu0 0.0
        %703 = vmatprep.subr.mxu0 0.0
        %704 = vmatpush1.msra.mxu0 0.0
        %705 = vmatprep.subr.mxu0 0.0
        %706 = vmatpush1.msra.mxu0 0.0
        %707 = vmatprep.subr.mxu0 0.0
        %708 = vmatpush1.msra.mxu0 0.0
        %709 = vmatprep.subr.mxu0 0.0
        %710 = vmatpush1.msra.mxu0 0.0
        %711 = vmatprep.subr.mxu0 0.0
        %712 = vmatpush1.msra.mxu0 0.0
        %713 = vmatprep.subr.mxu0 0.0
        %714 = vmatpush1.msra.mxu0 0.0
        %715 = vmatprep.subr.mxu0 0.0
        %716 = vmatpush1.msra.mxu0 0.0
        %717 = vmatprep.subr.mxu0 0.0
        %718 = vmatpush1.msra.mxu0 0.0
        %719 = vmatprep.subr.mxu0 0.0
        %720 = vmatpush1.msra.mxu0 0.0
        %721 = vmatprep.subr.mxu0 0.0
        %722 = vmatpush1.msra.mxu0 0.0
        %723 = vmatprep.subr.mxu0 0.0
        %724 = vmatpush1.msra.mxu0 0.0
        %725 = vmatprep.subr.mxu0 0.0
        %726 = vmatpush1.msra.mxu0 0.0
        %727 = vmatprep.subr.mxu0 0.0
        %728 = vmatpush1.msra.mxu0 0.0
        %729 = vmatprep.subr.mxu0 0.0
        %730 = vmatpush1.msra.mxu0 0.0
        %731 = vmatprep.mubr.f32.mxu0 0.0
        %732 = vmatmul.mubr.f32.gmra.mrb[0].mxu0 %v665
        %v733 = vpop.f32.mrb[0].mxu0
        %v734 = vadd.f32 0.0, %v733
        %v735 = vpop.f32.mrb[0].mxu0
        %v736 = vadd.f32 0.0, %v735
        %737 = vdwg.mxu0
        %741 = vrot.lane.b32.xlu0 %v643, 17
        %v742 = vpop.permute.xlu0 %741
        %743 = vrot.lane.b32.xlu0 %v644, 17
        %v744 = vpop.permute.xlu0 %743
        %745 = vrot.lane.b32.xlu0 %v645, 17
        %v746 = vpop.permute.xlu0 %745
        %vm747 = vcmask 138240
        %v748 = vsel %vm747, %v742, %v744
        %v749 = vsel %vm747, %v744, %v746
        %v753 = vsel %vm663, %v646, 0
        %755 = vmatprep.subr.mxu0 %v749
        %756 = vmatpush1.msra.mxu0 %v748
        %757 = vmatprep.subr.mxu0 0.0
        %758 = vmatpush1.msra.mxu0 0.0
        %759 = vmatprep.subr.mxu0 0.0
        %760 = vmatpush1.msra.mxu0 0.0
        %761 = vmatprep.subr.mxu0 0.0
        %762 = vmatpush1.msra.mxu0 0.0
        %763 = vmatprep.subr.mxu0 0.0
        %764 = vmatpush1.msra.mxu0 0.0
        %765 = vmatprep.subr.mxu0 0.0
        %766 = vmatpush1.msra.mxu0 0.0
        %767 = vmatprep.subr.mxu0 0.0
        %768 = vmatpush1.msra.mxu0 0.0
        %769 = vmatprep.subr.mxu0 0.0
        %770 = vmatpush1.msra.mxu0 0.0
        %771 = vmatprep.subr.mxu0 0.0
        %772 = vmatpush1.msra.mxu0 0.0
        %773 = vmatprep.subr.mxu0 0.0
        %774 = vmatpush1.msra.mxu0 0.0
        %775 = vmatprep.subr.mxu0 0.0
        %776 = vmatpush1.msra.mxu0 0.0
        %777 = vmatprep.subr.mxu0 0.0
        %778 = vmatpush1.msra.mxu0 0.0
        %779 = vmatprep.subr.mxu0 0.0
        %780 = vmatpush1.msra.mxu0 0.0
        %781 = vmatprep.subr.mxu0 0.0
        %782 = vmatpush1.msra.mxu0 0.0
        %783 = vmatprep.subr.mxu0 0.0
        %784 = vmatpush1.msra.mxu0 0.0
        %785 = vmatprep.subr.mxu0 0.0
        %786 = vmatpush1.msra.mxu0 0.0
        %787 = vmatprep.subr.mxu0 0.0
        %788 = vmatpush1.msra.mxu0 0.0
        %789 = vmatprep.subr.mxu0 0.0
        %790 = vmatpush1.msra.mxu0 0.0
        %791 = vmatprep.subr.mxu0 0.0
        %792 = vmatpush1.msra.mxu0 0.0
        %793 = vmatprep.subr.mxu0 0.0
        %794 = vmatpush1.msra.mxu0 0.0
        %795 = vmatprep.subr.mxu0 0.0
        %796 = vmatpush1.msra.mxu0 0.0
        %797 = vmatprep.subr.mxu0 0.0
        %798 = vmatpush1.msra.mxu0 0.0
        %799 = vmatprep.subr.mxu0 0.0
        %800 = vmatpush1.msra.mxu0 0.0
        %801 = vmatprep.subr.mxu0 0.0
        %802 = vmatpush1.msra.mxu0 0.0
        %803 = vmatprep.subr.mxu0 0.0
        %804 = vmatpush1.msra.mxu0 0.0
        %805 = vmatprep.subr.mxu0 0.0
        %806 = vmatpush1.msra.mxu0 0.0
        %807 = vmatprep.subr.mxu0 0.0
        %808 = vmatpush1.msra.mxu0 0.0
        %809 = vmatprep.subr.mxu0 0.0
        %810 = vmatpush1.msra.mxu0 0.0
        %811 = vmatprep.subr.mxu0 0.0
        %812 = vmatpush1.msra.mxu0 0.0
        %813 = vmatprep.subr.mxu0 0.0
        %814 = vmatpush1.msra.mxu0 0.0
        %815 = vmatprep.subr.mxu0 0.0
        %816 = vmatpush1.msra.mxu0 0.0
        %817 = vmatprep.subr.mxu0 0.0
        %818 = vmatpush1.msra.mxu0 0.0
        %819 = vmatprep.mubr.f32.mxu0 0.0
        %820 = vmatmul.mubr.f32.gmra.mrb[0].mxu0 %v753
        %v821 = vpop.f32.mrb[0].mxu0
        %v822 = vadd.f32 %v734, %v821
        %v823 = vpop.f32.mrb[0].mxu0
        %v824 = vadd.f32 %v736, %v823
        %825 = vdwg.mxu0
        %s826 = scalar_lea.vmem %s10, 4
        %v827 = vld [vmem:[%s826] sm:$0x3]
        %v829 = vlaneseq
        %v830 = vshrl.u32 %v829, 7
        %v831 = vsub.s32 0, %v830
        %v832 = vrot.slane %v827, %v831
        %v833 = vlaneseq
        %v834 = vshrl.u32 %v833, 7
        %v835 = vsub.s32 1, %v834
        %v836 = vrot.slane %v827, %v835
        %837 = vrot.lane.b32.xlu0 %v832, 113
        %v838 = vpop.permute.xlu0 %837
        %839 = vrot.lane.b32.xlu0 %v836, 113
        %v840 = vpop.permute.xlu0 %839
        %vm841 = vcmask 924672
        %v842 = vsel %vm841, %v838, %v840
        %v846 = vmul.f32 %v621, %v838
        %v847 = vmul.f32 %v622, %v842
        %v848 = vmul.f32 %v623, %v840
        %s849 = scalar_lea.vmem %s4, 8
        %v850 = vld [vmem:[%s849] sm:$0xf]
        %854 = vrot.lane.b32.xlu0 %v846, 15
        %v855 = vpop.permute.xlu0 %854
        %856 = vrot.lane.b32.xlu0 %v847, 15
        %v857 = vpop.permute.xlu0 %856
        %858 = vrot.lane.b32.xlu0 %v848, 15
        %v859 = vpop.permute.xlu0 %858
        %vm860 = vcmask 121856
        %v861 = vsel %vm860, %v855, %v857
        %v862 = vsel %vm860, %v857, %v859
        %v866 = vsel %vm663, %v850, 0
        %868 = vmatprep.subr.mxu0 %v862
        %869 = vmatpush1.msra.mxu0 %v861
        %870 = vmatprep.subr.mxu0 0.0
        %871 = vmatpush1.msra.mxu0 0.0
        %872 = vmatprep.subr.mxu0 0.0
        %873 = vmatpush1.msra.mxu0 0.0
        %874 = vmatprep.subr.mxu0 0.0
        %875 = vmatpush1.msra.mxu0 0.0
        %876 = vmatprep.subr.mxu0 0.0
        %877 = vmatpush1.msra.mxu0 0.0
        %878 = vmatprep.subr.mxu0 0.0
        %879 = vmatpush1.msra.mxu0 0.0
        %880 = vmatprep.subr.mxu0 0.0
        %881 = vmatpush1.msra.mxu0 0.0
        %882 = vmatprep.subr.mxu0 0.0
        %883 = vmatpush1.msra.mxu0 0.0
        %884 = vmatprep.subr.mxu0 0.0
        %885 = vmatpush1.msra.mxu0 0.0
        %886 = vmatprep.subr.mxu0 0.0
        %887 = vmatpush1.msra.mxu0 0.0
        %888 = vmatprep.subr.mxu0 0.0
        %889 = vmatpush1.msra.mxu0 0.0
        %890 = vmatprep.subr.mxu0 0.0
        %891 = vmatpush1.msra.mxu0 0.0
        %892 = vmatprep.subr.mxu0 0.0
        %893 = vmatpush1.msra.mxu0 0.0
        %894 = vmatprep.subr.mxu0 0.0
        %895 = vmatpush1.msra.mxu0 0.0
        %896 = vmatprep.subr.mxu0 0.0
        %897 = vmatpush1.msra.mxu0 0.0
        %898 = vmatprep.subr.mxu0 0.0
        %899 = vmatpush1.msra.mxu0 0.0
        %900 = vmatprep.subr.mxu0 0.0
        %901 = vmatpush1.msra.mxu0 0.0
        %902 = vmatprep.subr.mxu0 0.0
        %903 = vmatpush1.msra.mxu0 0.0
        %904 = vmatprep.subr.mxu0 0.0
        %905 = vmatpush1.msra.mxu0 0.0
        %906 = vmatprep.subr.mxu0 0.0
        %907 = vmatpush1.msra.mxu0 0.0
        %908 = vmatprep.subr.mxu0 0.0
        %909 = vmatpush1.msra.mxu0 0.0
        %910 = vmatprep.subr.mxu0 0.0
        %911 = vmatpush1.msra.mxu0 0.0
        %912 = vmatprep.subr.mxu0 0.0
        %913 = vmatpush1.msra.mxu0 0.0
        %914 = vmatprep.subr.mxu0 0.0
        %915 = vmatpush1.msra.mxu0 0.0
        %916 = vmatprep.subr.mxu0 0.0
        %917 = vmatpush1.msra.mxu0 0.0
        %918 = vmatprep.subr.mxu0 0.0
        %919 = vmatpush1.msra.mxu0 0.0
        %920 = vmatprep.subr.mxu0 0.0
        %921 = vmatpush1.msra.mxu0 0.0
        %922 = vmatprep.subr.mxu0 0.0
        %923 = vmatpush1.msra.mxu0 0.0
        %924 = vmatprep.subr.mxu0 0.0
        %925 = vmatpush1.msra.mxu0 0.0
        %926 = vmatprep.subr.mxu0 0.0
        %927 = vmatpush1.msra.mxu0 0.0
        %928 = vmatprep.subr.mxu0 0.0
        %929 = vmatpush1.msra.mxu0 0.0
        %930 = vmatprep.subr.mxu0 0.0
        %931 = vmatpush1.msra.mxu0 0.0
        %932 = vmatprep.mubr.f32.mxu0 0.0
        %933 = vmatmul.mubr.f32.gmra.mrb[0].mxu0 %v866
        %v934 = vpop.f32.mrb[0].mxu0
        %v935 = vadd.f32 0.0, %v934
        %v936 = vpop.f32.mrb[0].mxu0
        %v937 = vadd.f32 0.0, %v936
        %938 = vdwg.mxu0
        %v939 = vadd.f32 %v822, %v935
        %v940 = vadd.f32 %v824, %v937
        %941 = vrot.lane.b32.xlu0 %v629, 127
        %v942 = vpop.permute.xlu0 %941
        %943 = vrot.lane.b32.xlu0 %v633, 127
        %v944 = vpop.permute.xlu0 %943
        %vm945 = vcmask 1039360
        %v946 = vsel %vm945, %v942, %v944
        %v950 = vmul.f32 %v621, %v942
        %v951 = vmul.f32 %v622, %v946
        %v952 = vmul.f32 %v623, %v944
        %s953 = scalar_lea.vmem %s4, 12
        %v954 = vld [vmem:[%s953] sm:$0xf]
        %958 = vrot.lane.b32.xlu0 %v950, 1
        %v959 = vpop.permute.xlu0 %958
        %960 = vrot.lane.b32.xlu0 %v951, 1
        %v961 = vpop.permute.xlu0 %960
        %962 = vrot.lane.b32.xlu0 %v952, 1
        %v963 = vpop.permute.xlu0 %962
        %vm964 = vcmask 7168
        %v965 = vsel %vm964, %v959, %v961
        %v966 = vsel %vm964, %v961, %v963
        %v970 = vsel %vm663, %v954, 0
        %972 = vmatprep.subr.mxu0 %v966
        %973 = vmatpush1.msra.mxu0 %v965
        %974 = vmatprep.subr.mxu0 0.0
        %975 = vmatpush1.msra.mxu0 0.0
        %976 = vmatprep.subr.mxu0 0.0
        %977 = vmatpush1.msra.mxu0 0.0
        %978 = vmatprep.subr.mxu0 0.0
        %979 = vmatpush1.msra.mxu0 0.0
        %980 = vmatprep.subr.mxu0 0.0
        %981 = vmatpush1.msra.mxu0 0.0
        %982 = vmatprep.subr.mxu0 0.0
        %983 = vmatpush1.msra.mxu0 0.0
        %984 = vmatprep.subr.mxu0 0.0
        %985 = vmatpush1.msra.mxu0 0.0
        %986 = vmatprep.subr.mxu0 0.0
        %987 = vmatpush1.msra.mxu0 0.0
        %988 = vmatprep.subr.mxu0 0.0
        %989 = vmatpush1.msra.mxu0 0.0
        %990 = vmatprep.subr.mxu0 0.0
        %991 = vmatpush1.msra.mxu0 0.0
        %992 = vmatprep.subr.mxu0 0.0
        %993 = vmatpush1.msra.mxu0 0.0
        %994 = vmatprep.subr.mxu0 0.0
        %995 = vmatpush1.msra.mxu0 0.0
        %996 = vmatprep.subr.mxu0 0.0
        %997 = vmatpush1.msra.mxu0 0.0
        %998 = vmatprep.subr.mxu0 0.0
        %999 = vmatpush1.msra.mxu0 0.0
        %1000 = vmatprep.subr.mxu0 0.0
        %1001 = vmatpush1.msra.mxu0 0.0
        %1002 = vmatprep.subr.mxu0 0.0
        %1003 = vmatpush1.msra.mxu0 0.0
        %1004 = vmatprep.subr.mxu0 0.0
        %1005 = vmatpush1.msra.mxu0 0.0
        %1006 = vmatprep.subr.mxu0 0.0
        %1007 = vmatpush1.msra.mxu0 0.0
        %1008 = vmatprep.subr.mxu0 0.0
        %1009 = vmatpush1.msra.mxu0 0.0
        %1010 = vmatprep.subr.mxu0 0.0
        %1011 = vmatpush1.msra.mxu0 0.0
        %1012 = vmatprep.subr.mxu0 0.0
        %1013 = vmatpush1.msra.mxu0 0.0
        %1014 = vmatprep.subr.mxu0 0.0
        %1015 = vmatpush1.msra.mxu0 0.0
        %1016 = vmatprep.subr.mxu0 0.0
        %1017 = vmatpush1.msra.mxu0 0.0
        %1018 = vmatprep.subr.mxu0 0.0
        %1019 = vmatpush1.msra.mxu0 0.0
        %1020 = vmatprep.subr.mxu0 0.0
        %1021 = vmatpush1.msra.mxu0 0.0
        %1022 = vmatprep.subr.mxu0 0.0
        %1023 = vmatpush1.msra.mxu0 0.0
        %1024 = vmatprep.subr.mxu0 0.0
        %1025 = vmatpush1.msra.mxu0 0.0
        %1026 = vmatprep.subr.mxu0 0.0
        %1027 = vmatpush1.msra.mxu0 0.0
        %1028 = vmatprep.subr.mxu0 0.0
        %1029 = vmatpush1.msra.mxu0 0.0
        %1030 = vmatprep.subr.mxu0 0.0
        %1031 = vmatpush1.msra.mxu0 0.0
        %1032 = vmatprep.subr.mxu0 0.0
        %1033 = vmatpush1.msra.mxu0 0.0
        %1034 = vmatprep.subr.mxu0 0.0
        %1035 = vmatpush1.msra.mxu0 0.0
        %1036 = vmatprep.mubr.f32.mxu0 0.0
        %1037 = vmatmul.mubr.f32.gmra.mrb[0].mxu0 %v970
        %v1038 = vpop.f32.mrb[0].mxu0
        %v1039 = vadd.f32 0.0, %v1038
        %v1040 = vpop.f32.mrb[0].mxu0
        %v1041 = vadd.f32 0.0, %v1040
        %1042 = vdwg.mxu0
        %v1043 = vadd.f32 %v939, %v1039
        %v1044 = vadd.f32 %v940, %v1041
        %s1045 = scalar_lea.vmem %s4, 16
        %v1046 = vld [vmem:[%s1045] sm:$0xf]
        %v1048 = vsel %vm663, %v1046, 0
        %1050 = vmatprep.subr.mxu0 %v623
        %1051 = vmatpush1.msra.mxu0 %v622
        %1052 = vmatprep.subr.mxu0 0.0
        %1053 = vmatpush1.msra.mxu0 0.0
        %1054 = vmatprep.subr.mxu0 0.0
        %1055 = vmatpush1.msra.mxu0 0.0
        %1056 = vmatprep.subr.mxu0 0.0
        %1057 = vmatpush1.msra.mxu0 0.0
        %1058 = vmatprep.subr.mxu0 0.0
        %1059 = vmatpush1.msra.mxu0 0.0
        %1060 = vmatprep.subr.mxu0 0.0
        %1061 = vmatpush1.msra.mxu0 0.0
        %1062 = vmatprep.subr.mxu0 0.0
        %1063 = vmatpush1.msra.mxu0 0.0
        %1064 = vmatprep.subr.mxu0 0.0
        %1065 = vmatpush1.msra.mxu0 0.0
        %1066 = vmatprep.subr.mxu0 0.0
        %1067 = vmatpush1.msra.mxu0 0.0
        %1068 = vmatprep.subr.mxu0 0.0
        %1069 = vmatpush1.msra.mxu0 0.0
        %1070 = vmatprep.subr.mxu0 0.0
        %1071 = vmatpush1.msra.mxu0 0.0
        %1072 = vmatprep.subr.mxu0 0.0
        %1073 = vmatpush1.msra.mxu0 0.0
        %1074 = vmatprep.subr.mxu0 0.0
        %1075 = vmatpush1.msra.mxu0 0.0
        %1076 = vmatprep.subr.mxu0 0.0
        %1077 = vmatpush1.msra.mxu0 0.0
        %1078 = vmatprep.subr.mxu0 0.0
        %1079 = vmatpush1.msra.mxu0 0.0
        %1080 = vmatprep.subr.mxu0 0.0
        %1081 = vmatpush1.msra.mxu0 0.0
        %1082 = vmatprep.subr.mxu0 0.0
        %1083 = vmatpush1.msra.mxu0 0.0
        %1084 = vmatprep.subr.mxu0 0.0
        %1085 = vmatpush1.msra.mxu0 0.0
        %1086 = vmatprep.subr.mxu0 0.0
        %1087 = vmatpush1.msra.mxu0 0.0
        %1088 = vmatprep.subr.mxu0 0.0
        %1089 = vmatpush1.msra.mxu0 0.0
        %1090 = vmatprep.subr.mxu0 0.0
        %1091 = vmatpush1.msra.mxu0 0.0
        %1092 = vmatprep.subr.mxu0 0.0
        %1093 = vmatpush1.msra.mxu0 0.0
        %1094 = vmatprep.subr.mxu0 0.0
        %1095 = vmatpush1.msra.mxu0 0.0
        %1096 = vmatprep.subr.mxu0 0.0
        %1097 = vmatpush1.msra.mxu0 0.0
        %1098 = vmatprep.subr.mxu0 0.0
        %1099 = vmatpush1.msra.mxu0 0.0
        %1100 = vmatprep.subr.mxu0 0.0
        %1101 = vmatpush1.msra.mxu0 0.0
        %1102 = vmatprep.subr.mxu0 0.0
        %1103 = vmatpush1.msra.mxu0 0.0
        %1104 = vmatprep.subr.mxu0 0.0
        %1105 = vmatpush1.msra.mxu0 0.0
        %1106 = vmatprep.subr.mxu0 0.0
        %1107 = vmatpush1.msra.mxu0 0.0
        %1108 = vmatprep.subr.mxu0 0.0
        %1109 = vmatpush1.msra.mxu0 0.0
        %1110 = vmatprep.subr.mxu0 0.0
        %1111 = vmatpush1.msra.mxu0 0.0
        %1112 = vmatprep.subr.mxu0 0.0
        %1113 = vmatpush1.msra.mxu0 0.0
        %1114 = vmatprep.mubr.f32.mxu0 0.0
        %1115 = vmatmul.mubr.f32.gmra.mrb[0].mxu0 %v1048
        %v1116 = vpop.f32.mrb[0].mxu0
        %v1117 = vadd.f32 0.0, %v1116
        %v1118 = vpop.f32.mrb[0].mxu0
        %v1119 = vadd.f32 0.0, %v1118
        %1120 = vdwg.mxu0
        %v1121 = vadd.f32 %v1043, %v1117
        %v1122 = vadd.f32 %v1044, %v1119
        %v1123 = vld [vmem:[#allocation2 + $0x8] sm:$0xff]
        %v1124 = vld [vmem:[#allocation2 + $0x10] sm:$0xff]
        %v1125 = vld [vmem:[#allocation2 + $0x18] sm:$0xff]
        %1126 = vrot.lane.b32.xlu0 %v832, 1
        %v1127 = vpop.permute.xlu0 %1126
        %1128 = vrot.lane.b32.xlu0 %v836, 1
        %v1129 = vpop.permute.xlu0 %1128
        %v1130 = vsel %vm964, %v1127, %v1129
        %v1134 = vmul.f32 %v1123, %v1127
        %v1135 = vmul.f32 %v1124, %v1130
        %v1136 = vmul.f32 %v1125, %v1129
        %s1137 = scalar_lea.vmem %s4, 20
        %v1138 = vld [vmem:[%s1137] sm:$0xf]
        %1142 = vrot.lane.b32.xlu0 %v1134, 127
        %v1143 = vpop.permute.xlu0 %1142
        %1144 = vrot.lane.b32.xlu0 %v1135, 127
        %v1145 = vpop.permute.xlu0 %1144
        %1146 = vrot.lane.b32.xlu0 %v1136, 127
        %v1147 = vpop.permute.xlu0 %1146
        %v1148 = vsel %vm945, %v1143, %v1145
        %v1149 = vsel %vm945, %v1145, %v1147
        %v1153 = vsel %vm663, %v1138, 0
        %1155 = vmatprep.subr.mxu0 %v1149
        %1156 = vmatpush1.msra.mxu0 %v1148
        %1157 = vmatprep.subr.mxu0 0.0
        %1158 = vmatpush1.msra.mxu0 0.0
        %1159 = vmatprep.subr.mxu0 0.0
        %1160 = vmatpush1.msra.mxu0 0.0
        %1161 = vmatprep.subr.mxu0 0.0
        %1162 = vmatpush1.msra.mxu0 0.0
        %1163 = vmatprep.subr.mxu0 0.0
        %1164 = vmatpush1.msra.mxu0 0.0
        %1165 = vmatprep.subr.mxu0 0.0
        %1166 = vmatpush1.msra.mxu0 0.0
        %1167 = vmatprep.subr.mxu0 0.0
        %1168 = vmatpush1.msra.mxu0 0.0
        %1169 = vmatprep.subr.mxu0 0.0
        %1170 = vmatpush1.msra.mxu0 0.0
        %1171 = vmatprep.subr.mxu0 0.0
        %1172 = vmatpush1.msra.mxu0 0.0
        %1173 = vmatprep.subr.mxu0 0.0
        %1174 = vmatpush1.msra.mxu0 0.0
        %1175 = vmatprep.subr.mxu0 0.0
        %1176 = vmatpush1.msra.mxu0 0.0
        %1177 = vmatprep.subr.mxu0 0.0
        %1178 = vmatpush1.msra.mxu0 0.0
        %1179 = vmatprep.subr.mxu0 0.0
        %1180 = vmatpush1.msra.mxu0 0.0
        %1181 = vmatprep.subr.mxu0 0.0
        %1182 = vmatpush1.msra.mxu0 0.0
        %1183 = vmatprep.subr.mxu0 0.0
        %1184 = vmatpush1.msra.mxu0 0.0
        %1185 = vmatprep.subr.mxu0 0.0
        %1186 = vmatpush1.msra.mxu0 0.0
        %1187 = vmatprep.subr.mxu0 0.0
        %1188 = vmatpush1.msra.mxu0 0.0
        %1189 = vmatprep.subr.mxu0 0.0
        %1190 = vmatpush1.msra.mxu0 0.0
        %1191 = vmatprep.subr.mxu0 0.0
        %1192 = vmatpush1.msra.mxu0 0.0
        %1193 = vmatprep.subr.mxu0 0.0
        %1194 = vmatpush1.msra.mxu0 0.0
        %1195 = vmatprep.subr.mxu0 0.0
        %1196 = vmatpush1.msra.mxu0 0.0
        %1197 = vmatprep.subr.mxu0 0.0
        %1198 = vmatpush1.msra.mxu0 0.0
        %1199 = vmatprep.subr.mxu0 0.0
        %1200 = vmatpush1.msra.mxu0 0.0
        %1201 = vmatprep.subr.mxu0 0.0
        %1202 = vmatpush1.msra.mxu0 0.0
        %1203 = vmatprep.subr.mxu0 0.0
        %1204 = vmatpush1.msra.mxu0 0.0
        %1205 = vmatprep.subr.mxu0 0.0
        %1206 = vmatpush1.msra.mxu0 0.0
        %1207 = vmatprep.subr.mxu0 0.0
        %1208 = vmatpush1.msra.mxu0 0.0
        %1209 = vmatprep.subr.mxu0 0.0
        %1210 = vmatpush1.msra.mxu0 0.0
        %1211 = vmatprep.subr.mxu0 0.0
        %1212 = vmatpush1.msra.mxu0 0.0
        %1213 = vmatprep.subr.mxu0 0.0
        %1214 = vmatpush1.msra.mxu0 0.0
        %1215 = vmatprep.subr.mxu0 0.0
        %1216 = vmatpush1.msra.mxu0 0.0
        %1217 = vmatprep.subr.mxu0 0.0
        %1218 = vmatpush1.msra.mxu0 0.0
        %1219 = vmatprep.mubr.f32.mxu0 0.0
        %1220 = vmatmul.mubr.f32.gmra.mrb[0].mxu0 %v1153
        %v1221 = vpop.f32.mrb[0].mxu0
        %v1222 = vadd.f32 0.0, %v1221
        %v1223 = vpop.f32.mrb[0].mxu0
        %v1224 = vadd.f32 0.0, %v1223
        %1225 = vdwg.mxu0
        %v1226 = vadd.f32 %v1121, %v1222
        %v1227 = vadd.f32 %v1122, %v1224
        %1228 = vrot.lane.b32.xlu0 %v629, 15
        %v1229 = vpop.permute.xlu0 %1228
        %1230 = vrot.lane.b32.xlu0 %v633, 15
        %v1231 = vpop.permute.xlu0 %1230
        %v1232 = vsel %vm860, %v1229, %v1231
        %v1236 = vmul.f32 %v1123, %v1229
        %v1237 = vmul.f32 %v1124, %v1232
        %v1238 = vmul.f32 %v1125, %v1231
        %s1239 = scalar_lea.vmem %s4, 24
        %v1240 = vld [vmem:[%s1239] sm:$0xf]
        %1244 = vrot.lane.b32.xlu0 %v1236, 113
        %v1245 = vpop.permute.xlu0 %1244
        %1246 = vrot.lane.b32.xlu0 %v1237, 113
        %v1247 = vpop.permute.xlu0 %1246
        %1248 = vrot.lane.b32.xlu0 %v1238, 113
        %v1249 = vpop.permute.xlu0 %1248
        %v1250 = vsel %vm841, %v1245, %v1247
        %v1251 = vsel %vm841, %v1247, %v1249
        %v1255 = vsel %vm663, %v1240, 0
        %1257 = vmatprep.subr.mxu0 %v1251
        %1258 = vmatpush1.msra.mxu0 %v1250
        %1259 = vmatprep.subr.mxu0 0.0
        %1260 = vmatpush1.msra.mxu0 0.0
        %1261 = vmatprep.subr.mxu0 0.0
        %1262 = vmatpush1.msra.mxu0 0.0
        %1263 = vmatprep.subr.mxu0 0.0
        %1264 = vmatpush1.msra.mxu0 0.0
        %1265 = vmatprep.subr.mxu0 0.0
        %1266 = vmatpush1.msra.mxu0 0.0
        %1267 = vmatprep.subr.mxu0 0.0
        %1268 = vmatpush1.msra.mxu0 0.0
        %1269 = vmatprep.subr.mxu0 0.0
        %1270 = vmatpush1.msra.mxu0 0.0
        %1271 = vmatprep.subr.mxu0 0.0
        %1272 = vmatpush1.msra.mxu0 0.0
        %1273 = vmatprep.subr.mxu0 0.0
        %1274 = vmatpush1.msra.mxu0 0.0
        %1275 = vmatprep.subr.mxu0 0.0
        %1276 = vmatpush1.msra.mxu0 0.0
        %1277 = vmatprep.subr.mxu0 0.0
        %1278 = vmatpush1.msra.mxu0 0.0
        %1279 = vmatprep.subr.mxu0 0.0
        %1280 = vmatpush1.msra.mxu0 0.0
        %1281 = vmatprep.subr.mxu0 0.0
        %1282 = vmatpush1.msra.mxu0 0.0
        %1283 = vmatprep.subr.mxu0 0.0
        %1284 = vmatpush1.msra.mxu0 0.0
        %1285 = vmatprep.subr.mxu0 0.0
        %1286 = vmatpush1.msra.mxu0 0.0
        %1287 = vmatprep.subr.mxu0 0.0
        %1288 = vmatpush1.msra.mxu0 0.0
        %1289 = vmatprep.subr.mxu0 0.0
        %1290 = vmatpush1.msra.mxu0 0.0
        %1291 = vmatprep.subr.mxu0 0.0
        %1292 = vmatpush1.msra.mxu0 0.0
        %1293 = vmatprep.subr.mxu0 0.0
        %1294 = vmatpush1.msra.mxu0 0.0
        %1295 = vmatprep.subr.mxu0 0.0
        %1296 = vmatpush1.msra.mxu0 0.0
        %1297 = vmatprep.subr.mxu0 0.0
        %1298 = vmatpush1.msra.mxu0 0.0
        %1299 = vmatprep.subr.mxu0 0.0
        %1300 = vmatpush1.msra.mxu0 0.0
        %1301 = vmatprep.subr.mxu0 0.0
        %1302 = vmatpush1.msra.mxu0 0.0
        %1303 = vmatprep.subr.mxu0 0.0
        %1304 = vmatpush1.msra.mxu0 0.0
        %1305 = vmatprep.subr.mxu0 0.0
        %1306 = vmatpush1.msra.mxu0 0.0
        %1307 = vmatprep.subr.mxu0 0.0
        %1308 = vmatpush1.msra.mxu0 0.0
        %1309 = vmatprep.subr.mxu0 0.0
        %1310 = vmatpush1.msra.mxu0 0.0
        %1311 = vmatprep.subr.mxu0 0.0
        %1312 = vmatpush1.msra.mxu0 0.0
        %1313 = vmatprep.subr.mxu0 0.0
        %1314 = vmatpush1.msra.mxu0 0.0
        %1315 = vmatprep.subr.mxu0 0.0
        %1316 = vmatpush1.msra.mxu0 0.0
        %1317 = vmatprep.subr.mxu0 0.0
        %1318 = vmatpush1.msra.mxu0 0.0
        %1319 = vmatprep.subr.mxu0 0.0
        %1320 = vmatpush1.msra.mxu0 0.0
        %1321 = vmatprep.mubr.f32.mxu0 0.0
        %1322 = vmatmul.mubr.f32.gmra.mrb[0].mxu0 %v1255
        %v1323 = vpop.f32.mrb[0].mxu0
        %v1324 = vadd.f32 0.0, %v1323
        %v1325 = vpop.f32.mrb[0].mxu0
        %v1326 = vadd.f32 0.0, %v1325
        %1327 = vdwg.mxu0
        %v1328 = vadd.f32 %v1226, %v1324
        %v1329 = vadd.f32 %v1227, %v1326
        %s1330 = scalar_lea.vmem %s4, 28
        %v1331 = vld [vmem:[%s1330] sm:$0xf]
        %1335 = vrot.lane.b32.xlu0 %v1123, 112
        %v1336 = vpop.permute.xlu0 %1335
        %1337 = vrot.lane.b32.xlu0 %v1124, 112
        %v1338 = vpop.permute.xlu0 %1337
        %1339 = vrot.lane.b32.xlu0 %v1125, 112
        %v1340 = vpop.permute.xlu0 %1339
        %vm1341 = vcmask 916480
        %v1342 = vsel %vm1341, %v1336, %v1338
        %v1343 = vsel %vm1341, %v1338, %v1340
        %v1347 = vsel %vm663, %v1331, 0
        %1349 = vmatprep.subr.mxu0 %v1343
        %1350 = vmatpush1.msra.mxu0 %v1342
        %1351 = vmatprep.subr.mxu0 0.0
        %1352 = vmatpush1.msra.mxu0 0.0
        %1353 = vmatprep.subr.mxu0 0.0
        %1354 = vmatpush1.msra.mxu0 0.0
        %1355 = vmatprep.subr.mxu0 0.0
        %1356 = vmatpush1.msra.mxu0 0.0
        %1357 = vmatprep.subr.mxu0 0.0
        %1358 = vmatpush1.msra.mxu0 0.0
        %1359 = vmatprep.subr.mxu0 0.0
        %1360 = vmatpush1.msra.mxu0 0.0
        %1361 = vmatprep.subr.mxu0 0.0
        %1362 = vmatpush1.msra.mxu0 0.0
        %1363 = vmatprep.subr.mxu0 0.0
        %1364 = vmatpush1.msra.mxu0 0.0
        %1365 = vmatprep.subr.mxu0 0.0
        %1366 = vmatpush1.msra.mxu0 0.0
        %1367 = vmatprep.subr.mxu0 0.0
        %1368 = vmatpush1.msra.mxu0 0.0
        %1369 = vmatprep.subr.mxu0 0.0
        %1370 = vmatpush1.msra.mxu0 0.0
        %1371 = vmatprep.subr.mxu0 0.0
        %1372 = vmatpush1.msra.mxu0 0.0
        %1373 = vmatprep.subr.mxu0 0.0
        %1374 = vmatpush1.msra.mxu0 0.0
        %1375 = vmatprep.subr.mxu0 0.0
        %1376 = vmatpush1.msra.mxu0 0.0
        %1377 = vmatprep.subr.mxu0 0.0
        %1378 = vmatpush1.msra.mxu0 0.0
        %1379 = vmatprep.subr.mxu0 0.0
        %1380 = vmatpush1.msra.mxu0 0.0
        %1381 = vmatprep.subr.mxu0 0.0
        %1382 = vmatpush1.msra.mxu0 0.0
        %1383 = vmatprep.subr.mxu0 0.0
        %1384 = vmatpush1.msra.mxu0 0.0
        %1385 = vmatprep.subr.mxu0 0.0
        %1386 = vmatpush1.msra.mxu0 0.0
        %1387 = vmatprep.subr.mxu0 0.0
        %1388 = vmatpush1.msra.mxu0 0.0
        %1389 = vmatprep.subr.mxu0 0.0
        %1390 = vmatpush1.msra.mxu0 0.0
        %1391 = vmatprep.subr.mxu0 0.0
        %1392 = vmatpush1.msra.mxu0 0.0
        %1393 = vmatprep.subr.mxu0 0.0
        %1394 = vmatpush1.msra.mxu0 0.0
        %1395 = vmatprep.subr.mxu0 0.0
        %1396 = vmatpush1.msra.mxu0 0.0
        %1397 = vmatprep.subr.mxu0 0.0
        %1398 = vmatpush1.msra.mxu0 0.0
        %1399 = vmatprep.subr.mxu0 0.0
        %1400 = vmatpush1.msra.mxu0 0.0
        %1401 = vmatprep.subr.mxu0 0.0
        %1402 = vmatpush1.msra.mxu0 0.0
        %1403 = vmatprep.subr.mxu0 0.0
        %1404 = vmatpush1.msra.mxu0 0.0
        %1405 = vmatprep.subr.mxu0 0.0
        %1406 = vmatpush1.msra.mxu0 0.0
        %1407 = vmatprep.subr.mxu0 0.0
        %1408 = vmatpush1.msra.mxu0 0.0
        %1409 = vmatprep.subr.mxu0 0.0
        %1410 = vmatpush1.msra.mxu0 0.0
        %1411 = vmatprep.subr.mxu0 0.0
        %1412 = vmatpush1.msra.mxu0 0.0
        %1413 = vmatprep.mubr.f32.mxu0 0.0
        %1414 = vmatmul.mubr.f32.gmra.mrb[0].mxu0 %v1347
        %v1415 = vpop.f32.mrb[0].mxu0
        %v1416 = vadd.f32 0.0, %v1415
        %v1417 = vpop.f32.mrb[0].mxu0
        %v1418 = vadd.f32 0.0, %v1417
        %1419 = vdwg.mxu0
        %v1420 = vadd.f32 %v1328, %v1416
        %v1421 = vadd.f32 %v1329, %v1418
        %1422 = vrot.lane.b32.xlu0 %v832, 17
        %v1423 = vpop.permute.xlu0 %1422
        %1424 = vrot.lane.b32.xlu0 %v836, 17
        %v1425 = vpop.permute.xlu0 %1424
        %v1426 = vsel %vm747, %v1423, %v1425
        %v1430 = vmul.f32 %v1123, %v1423
        %v1431 = vmul.f32 %v1124, %v1426
        %v1432 = vmul.f32 %v1125, %v1425
        %s1433 = scalar_lea.vmem %s4, 32
        %v1434 = vld [vmem:[%s1433] sm:$0xf]
        %1438 = vrot.lane.b32.xlu0 %v1430, 111
        %v1439 = vpop.permute.xlu0 %1438
        %1440 = vrot.lane.b32.xlu0 %v1431, 111
        %v1441 = vpop.permute.xlu0 %1440
        %1442 = vrot.lane.b32.xlu0 %v1432, 111
        %v1443 = vpop.permute.xlu0 %1442
        %v1444 = vsel %vm638, %v1439, %v1441
        %v1445 = vsel %vm638, %v1441, %v1443
        %v1449 = vsel %vm663, %v1434, 0
        %1451 = vmatprep.subr.mxu0 %v1445
        %1452 = vmatpush1.msra.mxu0 %v1444
        %1453 = vmatprep.subr.mxu0 0.0
        %1454 = vmatpush1.msra.mxu0 0.0
        %1455 = vmatprep.subr.mxu0 0.0
        %1456 = vmatpush1.msra.mxu0 0.0
        %1457 = vmatprep.subr.mxu0 0.0
        %1458 = vmatpush1.msra.mxu0 0.0
        %1459 = vmatprep.subr.mxu0 0.0
        %1460 = vmatpush1.msra.mxu0 0.0
        %1461 = vmatprep.subr.mxu0 0.0
        %1462 = vmatpush1.msra.mxu0 0.0
        %1463 = vmatprep.subr.mxu0 0.0
        %1464 = vmatpush1.msra.mxu0 0.0
        %1465 = vmatprep.subr.mxu0 0.0
        %1466 = vmatpush1.msra.mxu0 0.0
        %1467 = vmatprep.subr.mxu0 0.0
        %1468 = vmatpush1.msra.mxu0 0.0
        %1469 = vmatprep.subr.mxu0 0.0
        %1470 = vmatpush1.msra.mxu0 0.0
        %1471 = vmatprep.subr.mxu0 0.0
        %1472 = vmatpush1.msra.mxu0 0.0
        %1473 = vmatprep.subr.mxu0 0.0
        %1474 = vmatpush1.msra.mxu0 0.0
        %1475 = vmatprep.subr.mxu0 0.0
        %1476 = vmatpush1.msra.mxu0 0.0
        %1477 = vmatprep.subr.mxu0 0.0
        %1478 = vmatpush1.msra.mxu0 0.0
        %1479 = vmatprep.subr.mxu0 0.0
        %1480 = vmatpush1.msra.mxu0 0.0
        %1481 = vmatprep.subr.mxu0 0.0
        %1482 = vmatpush1.msra.mxu0 0.0
        %1483 = vmatprep.subr.mxu0 0.0
        %1484 = vmatpush1.msra.mxu0 0.0
        %1485 = vmatprep.subr.mxu0 0.0
        %1486 = vmatpush1.msra.mxu0 0.0
        %1487 = vmatprep.subr.mxu0 0.0
        %1488 = vmatpush1.msra.mxu0 0.0
        %1489 = vmatprep.subr.mxu0 0.0
        %1490 = vmatpush1.msra.mxu0 0.0
        %1491 = vmatprep.subr.mxu0 0.0
        %1492 = vmatpush1.msra.mxu0 0.0
        %1493 = vmatprep.subr.mxu0 0.0
        %1494 = vmatpush1.msra.mxu0 0.0
        %1495 = vmatprep.subr.mxu0 0.0
        %1496 = vmatpush1.msra.mxu0 0.0
        %1497 = vmatprep.subr.mxu0 0.0
        %1498 = vmatpush1.msra.mxu0 0.0
        %1499 = vmatprep.subr.mxu0 0.0
        %1500 = vmatpush1.msra.mxu0 0.0
        %1501 = vmatprep.subr.mxu0 0.0
        %1502 = vmatpush1.msra.mxu0 0.0
        %1503 = vmatprep.subr.mxu0 0.0
        %1504 = vmatpush1.msra.mxu0 0.0
        %1505 = vmatprep.subr.mxu0 0.0
        %1506 = vmatpush1.msra.mxu0 0.0
        %1507 = vmatprep.subr.mxu0 0.0
        %1508 = vmatpush1.msra.mxu0 0.0
        %1509 = vmatprep.subr.mxu0 0.0
        %1510 = vmatpush1.msra.mxu0 0.0
        %1511 = vmatprep.subr.mxu0 0.0
        %1512 = vmatpush1.msra.mxu0 0.0
        %1513 = vmatprep.subr.mxu0 0.0
        %1514 = vmatpush1.msra.mxu0 0.0
        %1515 = vmatprep.mubr.f32.mxu0 0.0
        %1516 = vmatmul.mubr.f32.gmra.mrb[0].mxu0 %v1449
        %v1517 = vpop.f32.mrb[0].mxu0
        %v1518 = vadd.f32 0.0, %v1517
        %v1519 = vpop.f32.mrb[0].mxu0
        %v1520 = vadd.f32 0.0, %v1519
        %1521 = vdwg.mxu0
        %v1522 = vadd.f32 %v1420, %v1518
        %v1523 = vadd.f32 %v1421, %v1520
        %v1524 = vld [vmem:[%s5] sm:$0xf]
        %1526 = vset.pattern.permute.xlu0 0
        %1527 = vperm.xlu0 %1526, %v1524
        %v1528 = vpop.permute.xlu0 %1527
        %v1530 = vmul.f32 %v1522, %v1528
        %v1531 = vmul.f32 %v1523, %v1528
        %v1532 = vld [vmem:[%s6] sm:$0xf]
        %1534 = vset.pattern.permute.xlu0 0
        %1535 = vperm.xlu0 %1534, %v1532
        %v1536 = vpop.permute.xlu0 %1535
        %v1538 = vadd.f32 %v1530, %v1536
        %v1539 = vadd.f32 %v1531, %v1536
        %v1540 = vmax.f32 %v1538, 0.0
        %v1541 = vmax.f32 %v1539, 0.0
        %v1544 = vcombine.low %v1540, %v1541
        %1546 = vst [vmem:[#allocation3 + $0x4] sm:$0xff] %v1544
        %v1547 = vld [vmem:[#allocation3] sm:$0xff]
        %v1548 = vld [vmem:[#allocation3 + $0x8] sm:$0xf]
        %v1549 = vld [vmem:[%s10] sm:$0x3]
        %v1551 = vlaneseq
        %v1552 = vshrl.u32 %v1551, 7
        %v1553 = vsub.s32 0, %v1552
        %v1554 = vrot.slane %v1549, %v1553
        %v1555 = vlaneseq
        %v1556 = vshrl.u32 %v1555, 7
        %v1557 = vsub.s32 1, %v1556
        %v1558 = vrot.slane %v1549, %v1557
        %v1559 = vcombine.low %v1554, %v1558
        %1560 = vrot.lane.b32.xlu0 %v1559, 111
        %v1561 = vpop.permute.xlu0 %1560
        %v1562 = vrot.slane %v1561, 4
        %v1563 = vsel %vm638, %v1562, %v1561
        %v1566 = vmul.f32 %v1547, %v1563
        %v1567 = vmul.f32 %v1548, %v1562
        %v1568 = vld [vmem:[%s7] sm:$0xf]
        %s1569 = scalar_lea.vmem %s7, 4
        %v1570 = vld [vmem:[%s1569] sm:$0xf]
        %v1573 = vcombine.high %v1547, %v1547
        %1574 = vrot.lane.b32.xlu0 %v1547, 16
        %v1575 = vpop.permute.xlu0 %1574
        %1576 = vrot.lane.b32.xlu0 %v1573, 16
        %v1577 = vpop.permute.xlu0 %1576
        %1578 = vrot.lane.b32.xlu0 %v1548, 16
        %v1579 = vpop.permute.xlu0 %1578
        %v1580 = vsel %vm658, %v1575, %v1577
        %v1581 = vsel %vm658, %v1577, %v1579
        %vm1582 = vcmask 31744
        %v1584 = vsel %vm1582, %v1570, 0
        %vm1586 = vcmask 1043456
        %v1587 = vsel %vm1586, %v1580, 0
        %v1589 = vsel %vm1586, %v1581, 0
        %1591 = vmatprep.subr.mxu0 %v1589
        %1592 = vmatpush1.msra.mxu0 %v1587
        %1593 = vmatprep.subr.mxu0 0.0
        %1594 = vmatpush1.msra.mxu0 0.0
        %1595 = vmatprep.subr.mxu0 0.0
        %1596 = vmatpush1.msra.mxu0 0.0
        %1597 = vmatprep.subr.mxu0 0.0
        %1598 = vmatpush1.msra.mxu0 0.0
        %1599 = vmatprep.subr.mxu0 0.0
        %1600 = vmatpush1.msra.mxu0 0.0
        %1601 = vmatprep.subr.mxu0 0.0
        %1602 = vmatpush1.msra.mxu0 0.0
        %1603 = vmatprep.subr.mxu0 0.0
        %1604 = vmatpush1.msra.mxu0 0.0
        %1605 = vmatprep.subr.mxu0 0.0
        %1606 = vmatpush1.msra.mxu0 0.0
        %1607 = vmatprep.subr.mxu0 0.0
        %1608 = vmatpush1.msra.mxu0 0.0
        %1609 = vmatprep.subr.mxu0 0.0
        %1610 = vmatpush1.msra.mxu0 0.0
        %1611 = vmatprep.subr.mxu0 0.0
        %1612 = vmatpush1.msra.mxu0 0.0
        %1613 = vmatprep.subr.mxu0 0.0
        %1614 = vmatpush1.msra.mxu0 0.0
        %1615 = vmatprep.subr.mxu0 0.0
        %1616 = vmatpush1.msra.mxu0 0.0
        %1617 = vmatprep.subr.mxu0 0.0
        %1618 = vmatpush1.msra.mxu0 0.0
        %1619 = vmatprep.subr.mxu0 0.0
        %1620 = vmatpush1.msra.mxu0 0.0
        %1621 = vmatprep.subr.mxu0 0.0
        %1622 = vmatpush1.msra.mxu0 0.0
        %1623 = vmatprep.subr.mxu0 0.0
        %1624 = vmatpush1.msra.mxu0 0.0
        %1625 = vmatprep.subr.mxu0 0.0
        %1626 = vmatpush1.msra.mxu0 0.0
        %1627 = vmatprep.subr.mxu0 0.0
        %1628 = vmatpush1.msra.mxu0 0.0
        %1629 = vmatprep.subr.mxu0 0.0
        %1630 = vmatpush1.msra.mxu0 0.0
        %1631 = vmatprep.subr.mxu0 0.0
        %1632 = vmatpush1.msra.mxu0 0.0
        %1633 = vmatprep.subr.mxu0 0.0
        %1634 = vmatpush1.msra.mxu0 0.0
        %1635 = vmatprep.subr.mxu0 0.0
        %1636 = vmatpush1.msra.mxu0 0.0
        %1637 = vmatprep.subr.mxu0 0.0
        %1638 = vmatpush1.msra.mxu0 0.0
        %1639 = vmatprep.subr.mxu0 0.0
        %1640 = vmatpush1.msra.mxu0 0.0
        %1641 = vmatprep.subr.mxu0 0.0
        %1642 = vmatpush1.msra.mxu0 0.0
        %1643 = vmatprep.subr.mxu0 0.0
        %1644 = vmatpush1.msra.mxu0 0.0
        %1645 = vmatprep.subr.mxu0 0.0
        %1646 = vmatpush1.msra.mxu0 0.0
        %1647 = vmatprep.subr.mxu0 0.0
        %1648 = vmatpush1.msra.mxu0 0.0
        %1649 = vmatprep.subr.mxu0 0.0
        %1650 = vmatpush1.msra.mxu0 0.0
        %1651 = vmatprep.subr.mxu0 0.0
        %1652 = vmatpush1.msra.mxu0 0.0
        %1653 = vmatprep.subr.mxu0 0.0
        %1654 = vmatpush1.msra.mxu0 0.0
        %1655 = vmatprep.mubr.f32.mxu0 0.0
        %1656 = vmatmul.mubr.f32.gmra.mrb[0].mxu0 %v1584
        %v1657 = vpop.f32.mrb[0].mxu0
        %v1658 = vadd.f32 0.0, %v1657
        %v1659 = vpop.f32.mrb[0].mxu0
        %v1660 = vadd.f32 0.0, %v1659
        %1661 = vdwg.mxu0
        %v1664 = vcombine.high %v1566, %v1566
        %1665 = vrot.lane.b32.xlu0 %v1566, 17
        %v1666 = vpop.permute.xlu0 %1665
        %1667 = vrot.lane.b32.xlu0 %v1664, 17
        %v1668 = vpop.permute.xlu0 %1667
        %1669 = vrot.lane.b32.xlu0 %v1567, 17
        %v1670 = vpop.permute.xlu0 %1669
        %v1671 = vsel %vm747, %v1666, %v1668
        %v1672 = vsel %vm747, %v1668, %v1670
        %v1674 = vsel %vm1582, %v1568, 0
        %v1676 = vsel %vm1586, %v1671, 0
        %v1678 = vsel %vm1586, %v1672, 0
        %1680 = vmatprep.subr.mxu0 %v1678
        %1681 = vmatpush1.msra.mxu0 %v1676
        %1682 = vmatprep.subr.mxu0 0.0
        %1683 = vmatpush1.msra.mxu0 0.0
        %1684 = vmatprep.subr.mxu0 0.0
        %1685 = vmatpush1.msra.mxu0 0.0
        %1686 = vmatprep.subr.mxu0 0.0
        %1687 = vmatpush1.msra.mxu0 0.0
        %1688 = vmatprep.subr.mxu0 0.0
        %1689 = vmatpush1.msra.mxu0 0.0
        %1690 = vmatprep.subr.mxu0 0.0
        %1691 = vmatpush1.msra.mxu0 0.0
        %1692 = vmatprep.subr.mxu0 0.0
        %1693 = vmatpush1.msra.mxu0 0.0
        %1694 = vmatprep.subr.mxu0 0.0
        %1695 = vmatpush1.msra.mxu0 0.0
        %1696 = vmatprep.subr.mxu0 0.0
        %1697 = vmatpush1.msra.mxu0 0.0
        %1698 = vmatprep.subr.mxu0 0.0
        %1699 = vmatpush1.msra.mxu0 0.0
        %1700 = vmatprep.subr.mxu0 0.0
        %1701 = vmatpush1.msra.mxu0 0.0
        %1702 = vmatprep.subr.mxu0 0.0
        %1703 = vmatpush1.msra.mxu0 0.0
        %1704 = vmatprep.subr.mxu0 0.0
        %1705 = vmatpush1.msra.mxu0 0.0
        %1706 = vmatprep.subr.mxu0 0.0
        %1707 = vmatpush1.msra.mxu0 0.0
        %1708 = vmatprep.subr.mxu0 0.0
        %1709 = vmatpush1.msra.mxu0 0.0
        %1710 = vmatprep.subr.mxu0 0.0
        %1711 = vmatpush1.msra.mxu0 0.0
        %1712 = vmatprep.subr.mxu0 0.0
        %1713 = vmatpush1.msra.mxu0 0.0
        %1714 = vmatprep.subr.mxu0 0.0
        %1715 = vmatpush1.msra.mxu0 0.0
        %1716 = vmatprep.subr.mxu0 0.0
        %1717 = vmatpush1.msra.mxu0 0.0
        %1718 = vmatprep.subr.mxu0 0.0
        %1719 = vmatpush1.msra.mxu0 0.0
        %1720 = vmatprep.subr.mxu0 0.0
        %1721 = vmatpush1.msra.mxu0 0.0
        %1722 = vmatprep.subr.mxu0 0.0
        %1723 = vmatpush1.msra.mxu0 0.0
        %1724 = vmatprep.subr.mxu0 0.0
        %1725 = vmatpush1.msra.mxu0 0.0
        %1726 = vmatprep.subr.mxu0 0.0
        %1727 = vmatpush1.msra.mxu0 0.0
        %1728 = vmatprep.subr.mxu0 0.0
        %1729 = vmatpush1.msra.mxu0 0.0
        %1730 = vmatprep.subr.mxu0 0.0
        %1731 = vmatpush1.msra.mxu0 0.0
        %1732 = vmatprep.subr.mxu0 0.0
        %1733 = vmatpush1.msra.mxu0 0.0
        %1734 = vmatprep.subr.mxu0 0.0
        %1735 = vmatpush1.msra.mxu0 0.0
        %1736 = vmatprep.subr.mxu0 0.0
        %1737 = vmatpush1.msra.mxu0 0.0
        %1738 = vmatprep.subr.mxu0 0.0
        %1739 = vmatpush1.msra.mxu0 0.0
        %1740 = vmatprep.subr.mxu0 0.0
        %1741 = vmatpush1.msra.mxu0 0.0
        %1742 = vmatprep.subr.mxu0 0.0
        %1743 = vmatpush1.msra.mxu0 0.0
        %1744 = vmatprep.mubr.f32.mxu0 0.0
        %1745 = vmatmul.mubr.f32.gmra.mrb[0].mxu0 %v1674
        %v1746 = vpop.f32.mrb[0].mxu0
        %v1747 = vadd.f32 %v1658, %v1746
        %v1748 = vpop.f32.mrb[0].mxu0
        %v1749 = vadd.f32 %v1660, %v1748
        %1750 = vdwg.mxu0
        %v1751 = vld [vmem:[#allocation3] sm:$0xff]
        %v1752 = vld [vmem:[#allocation3 + $0x8] sm:$0xf]
        %v1753 = vld [vmem:[%s826] sm:$0x3]
        %v1755 = vlaneseq
        %v1756 = vshrl.u32 %v1755, 7
        %v1757 = vsub.s32 0, %v1756
        %v1758 = vrot.slane %v1753, %v1757
        %v1759 = vlaneseq
        %v1760 = vshrl.u32 %v1759, 7
        %v1761 = vsub.s32 1, %v1760
        %v1762 = vrot.slane %v1753, %v1761
        %v1763 = vcombine.low %v1758, %v1762
        %1764 = vrot.lane.b32.xlu0 %v1763, 113
        %v1765 = vpop.permute.xlu0 %1764
        %v1766 = vrot.slane %v1765, 4
        %v1767 = vsel %vm841, %v1766, %v1765
        %v1770 = vmul.f32 %v1751, %v1767
        %v1771 = vmul.f32 %v1752, %v1766
        %s1772 = scalar_lea.vmem %s7, 8
        %v1773 = vld [vmem:[%s1772] sm:$0xf]
        %v1776 = vcombine.high %v1770, %v1770
        %1777 = vrot.lane.b32.xlu0 %v1770, 15
        %v1778 = vpop.permute.xlu0 %1777
        %1779 = vrot.lane.b32.xlu0 %v1776, 15
        %v1780 = vpop.permute.xlu0 %1779
        %1781 = vrot.lane.b32.xlu0 %v1771, 15
        %v1782 = vpop.permute.xlu0 %1781
        %v1783 = vsel %vm860, %v1778, %v1780
        %v1784 = vsel %vm860, %v1780, %v1782
        %v1786 = vsel %vm1582, %v1773, 0
        %v1788 = vsel %vm1586, %v1783, 0
        %v1790 = vsel %vm1586, %v1784, 0
        %1792 = vmatprep.subr.mxu0 %v1790
        %1793 = vmatpush1.msra.mxu0 %v1788
        %1794 = vmatprep.subr.mxu0 0.0
        %1795 = vmatpush1.msra.mxu0 0.0
        %1796 = vmatprep.subr.mxu0 0.0
        %1797 = vmatpush1.msra.mxu0 0.0
        %1798 = vmatprep.subr.mxu0 0.0
        %1799 = vmatpush1.msra.mxu0 0.0
        %1800 = vmatprep.subr.mxu0 0.0
        %1801 = vmatpush1.msra.mxu0 0.0
        %1802 = vmatprep.subr.mxu0 0.0
        %1803 = vmatpush1.msra.mxu0 0.0
        %1804 = vmatprep.subr.mxu0 0.0
        %1805 = vmatpush1.msra.mxu0 0.0
        %1806 = vmatprep.subr.mxu0 0.0
        %1807 = vmatpush1.msra.mxu0 0.0
        %1808 = vmatprep.subr.mxu0 0.0
        %1809 = vmatpush1.msra.mxu0 0.0
        %1810 = vmatprep.subr.mxu0 0.0
        %1811 = vmatpush1.msra.mxu0 0.0
        %1812 = vmatprep.subr.mxu0 0.0
        %1813 = vmatpush1.msra.mxu0 0.0
        %1814 = vmatprep.subr.mxu0 0.0
        %1815 = vmatpush1.msra.mxu0 0.0
        %1816 = vmatprep.subr.mxu0 0.0
        %1817 = vmatpush1.msra.mxu0 0.0
        %1818 = vmatprep.subr.mxu0 0.0
        %1819 = vmatpush1.msra.mxu0 0.0
        %1820 = vmatprep.subr.mxu0 0.0
        %1821 = vmatpush1.msra.mxu0 0.0
        %1822 = vmatprep.subr.mxu0 0.0
        %1823 = vmatpush1.msra.mxu0 0.0
        %1824 = vmatprep.subr.mxu0 0.0
        %1825 = vmatpush1.msra.mxu0 0.0
        %1826 = vmatprep.subr.mxu0 0.0
        %1827 = vmatpush1.msra.mxu0 0.0
        %1828 = vmatprep.subr.mxu0 0.0
        %1829 = vmatpush1.msra.mxu0 0.0
        %1830 = vmatprep.subr.mxu0 0.0
        %1831 = vmatpush1.msra.mxu0 0.0
        %1832 = vmatprep.subr.mxu0 0.0
        %1833 = vmatpush1.msra.mxu0 0.0
        %1834 = vmatprep.subr.mxu0 0.0
        %1835 = vmatpush1.msra.mxu0 0.0
        %1836 = vmatprep.subr.mxu0 0.0
        %1837 = vmatpush1.msra.mxu0 0.0
        %1838 = vmatprep.subr.mxu0 0.0
        %1839 = vmatpush1.msra.mxu0 0.0
        %1840 = vmatprep.subr.mxu0 0.0
        %1841 = vmatpush1.msra.mxu0 0.0
        %1842 = vmatprep.subr.mxu0 0.0
        %1843 = vmatpush1.msra.mxu0 0.0
        %1844 = vmatprep.subr.mxu0 0.0
        %1845 = vmatpush1.msra.mxu0 0.0
        %1846 = vmatprep.subr.mxu0 0.0
        %1847 = vmatpush1.msra.mxu0 0.0
        %1848 = vmatprep.subr.mxu0 0.0
        %1849 = vmatpush1.msra.mxu0 0.0
        %1850 = vmatprep.subr.mxu0 0.0
        %1851 = vmatpush1.msra.mxu0 0.0
        %1852 = vmatprep.subr.mxu0 0.0
        %1853 = vmatpush1.msra.mxu0 0.0
        %1854 = vmatprep.subr.mxu0 0.0
        %1855 = vmatpush1.msra.mxu0 0.0
        %1856 = vmatprep.mubr.f32.mxu0 0.0
        %1857 = vmatmul.mubr.f32.gmra.mrb[0].mxu0 %v1786
        %v1858 = vpop.f32.mrb[0].mxu0
        %v1859 = vadd.f32 0.0, %v1858
        %v1860 = vpop.f32.mrb[0].mxu0
        %v1861 = vadd.f32 0.0, %v1860
        %1862 = vdwg.mxu0
        %v1863 = vadd.f32 %v1747, %v1859
        %v1864 = vadd.f32 %v1749, %v1861
        %v1865 = vld [vmem:[#allocation3] sm:$0xff]
        %v1866 = vld [vmem:[#allocation3 + $0x8] sm:$0xf]
        %1867 = vrot.lane.b32.xlu0 %v1559, 127
        %v1868 = vpop.permute.xlu0 %1867
        %v1869 = vrot.slane %v1868, 4
        %v1870 = vsel %vm945, %v1869, %v1868
        %v1873 = vmul.f32 %v1865, %v1870
        %v1874 = vmul.f32 %v1866, %v1869
        %s1875 = scalar_lea.vmem %s7, 12
        %v1876 = vld [vmem:[%s1875] sm:$0xf]
        %v1879 = vcombine.high %v1873, %v1873
        %1880 = vrot.lane.b32.xlu0 %v1873, 1
        %v1881 = vpop.permute.xlu0 %1880
        %1882 = vrot.lane.b32.xlu0 %v1879, 1
        %v1883 = vpop.permute.xlu0 %1882
        %1884 = vrot.lane.b32.xlu0 %v1874, 1
        %v1885 = vpop.permute.xlu0 %1884
        %v1886 = vsel %vm964, %v1881, %v1883
        %v1887 = vsel %vm964, %v1883, %v1885
        %v1889 = vsel %vm1582, %v1876, 0
        %v1891 = vsel %vm1586, %v1886, 0
        %v1893 = vsel %vm1586, %v1887, 0
        %1895 = vmatprep.subr.mxu0 %v1893
        %1896 = vmatpush1.msra.mxu0 %v1891
        %1897 = vmatprep.subr.mxu0 0.0
        %1898 = vmatpush1.msra.mxu0 0.0
        %1899 = vmatprep.subr.mxu0 0.0
        %1900 = vmatpush1.msra.mxu0 0.0
        %1901 = vmatprep.subr.mxu0 0.0
        %1902 = vmatpush1.msra.mxu0 0.0
        %1903 = vmatprep.subr.mxu0 0.0
        %1904 = vmatpush1.msra.mxu0 0.0
        %1905 = vmatprep.subr.mxu0 0.0
        %1906 = vmatpush1.msra.mxu0 0.0
        %1907 = vmatprep.subr.mxu0 0.0
        %1908 = vmatpush1.msra.mxu0 0.0
        %1909 = vmatprep.subr.mxu0 0.0
        %1910 = vmatpush1.msra.mxu0 0.0
        %1911 = vmatprep.subr.mxu0 0.0
        %1912 = vmatpush1.msra.mxu0 0.0
        %1913 = vmatprep.subr.mxu0 0.0
        %1914 = vmatpush1.msra.mxu0 0.0
        %1915 = vmatprep.subr.mxu0 0.0
        %1916 = vmatpush1.msra.mxu0 0.0
        %1917 = vmatprep.subr.mxu0 0.0
        %1918 = vmatpush1.msra.mxu0 0.0
        %1919 = vmatprep.subr.mxu0 0.0
        %1920 = vmatpush1.msra.mxu0 0.0
        %1921 = vmatprep.subr.mxu0 0.0
        %1922 = vmatpush1.msra.mxu0 0.0
        %1923 = vmatprep.subr.mxu0 0.0
        %1924 = vmatpush1.msra.mxu0 0.0
        %1925 = vmatprep.subr.mxu0 0.0
        %1926 = vmatpush1.msra.mxu0 0.0
        %1927 = vmatprep.subr.mxu0 0.0
        %1928 = vmatpush1.msra.mxu0 0.0
        %1929 = vmatprep.subr.mxu0 0.0
        %1930 = vmatpush1.msra.mxu0 0.0
        %1931 = vmatprep.subr.mxu0 0.0
        %1932 = vmatpush1.msra.mxu0 0.0
        %1933 = vmatprep.subr.mxu0 0.0
        %1934 = vmatpush1.msra.mxu0 0.0
        %1935 = vmatprep.subr.mxu0 0.0
        %1936 = vmatpush1.msra.mxu0 0.0
        %1937 = vmatprep.subr.mxu0 0.0
        %1938 = vmatpush1.msra.mxu0 0.0
        %1939 = vmatprep.subr.mxu0 0.0
        %1940 = vmatpush1.msra.mxu0 0.0
        %1941 = vmatprep.subr.mxu0 0.0
        %1942 = vmatpush1.msra.mxu0 0.0
        %1943 = vmatprep.subr.mxu0 0.0
        %1944 = vmatpush1.msra.mxu0 0.0
        %1945 = vmatprep.subr.mxu0 0.0
        %1946 = vmatpush1.msra.mxu0 0.0
        %1947 = vmatprep.subr.mxu0 0.0
        %1948 = vmatpush1.msra.mxu0 0.0
        %1949 = vmatprep.subr.mxu0 0.0
        %1950 = vmatpush1.msra.mxu0 0.0
        %1951 = vmatprep.subr.mxu0 0.0
        %1952 = vmatpush1.msra.mxu0 0.0
        %1953 = vmatprep.subr.mxu0 0.0
        %1954 = vmatpush1.msra.mxu0 0.0
        %1955 = vmatprep.subr.mxu0 0.0
        %1956 = vmatpush1.msra.mxu0 0.0
        %1957 = vmatprep.subr.mxu0 0.0
        %1958 = vmatpush1.msra.mxu0 0.0
        %1959 = vmatprep.mubr.f32.mxu0 0.0
        %1960 = vmatmul.mubr.f32.gmra.mrb[0].mxu0 %v1889
        %v1961 = vpop.f32.mrb[0].mxu0
        %v1962 = vadd.f32 0.0, %v1961
        %v1963 = vpop.f32.mrb[0].mxu0
        %v1964 = vadd.f32 0.0, %v1963
        %1965 = vdwg.mxu0
        %v1966 = vadd.f32 %v1863, %v1962
        %v1967 = vadd.f32 %v1864, %v1964
        %v1968 = vld [vmem:[#allocation3 + $0x4] sm:$0xff]
        %s1969 = scalar_lea.vmem %s7, 16
        %v1970 = vld [vmem:[%s1969] sm:$0xf]
        %v1972 = vcombine.high %v1968, %v1968
        %v1974 = vsel %vm1582, %v1970, 0
        %v1976 = vsel %vm1586, %v1968, 0
        %v1978 = vsel %vm1586, %v1972, 0
        %1980 = vmatprep.subr.mxu0 %v1978
        %1981 = vmatpush1.msra.mxu0 %v1976
        %1982 = vmatprep.subr.mxu0 0.0
        %1983 = vmatpush1.msra.mxu0 0.0
        %1984 = vmatprep.subr.mxu0 0.0
        %1985 = vmatpush1.msra.mxu0 0.0
        %1986 = vmatprep.subr.mxu0 0.0
        %1987 = vmatpush1.msra.mxu0 0.0
        %1988 = vmatprep.subr.mxu0 0.0
        %1989 = vmatpush1.msra.mxu0 0.0
        %1990 = vmatprep.subr.mxu0 0.0
        %1991 = vmatpush1.msra.mxu0 0.0
        %1992 = vmatprep.subr.mxu0 0.0
        %1993 = vmatpush1.msra.mxu0 0.0
        %1994 = vmatprep.subr.mxu0 0.0
        %1995 = vmatpush1.msra.mxu0 0.0
        %1996 = vmatprep.subr.mxu0 0.0
        %1997 = vmatpush1.msra.mxu0 0.0
        %1998 = vmatprep.subr.mxu0 0.0
        %1999 = vmatpush1.msra.mxu0 0.0
        %2000 = vmatprep.subr.mxu0 0.0
        %2001 = vmatpush1.msra.mxu0 0.0
        %2002 = vmatprep.subr.mxu0 0.0
        %2003 = vmatpush1.msra.mxu0 0.0
        %2004 = vmatprep.subr.mxu0 0.0
        %2005 = vmatpush1.msra.mxu0 0.0
        %2006 = vmatprep.subr.mxu0 0.0
        %2007 = vmatpush1.msra.mxu0 0.0
        %2008 = vmatprep.subr.mxu0 0.0
        %2009 = vmatpush1.msra.mxu0 0.0
        %2010 = vmatprep.subr.mxu0 0.0
        %2011 = vmatpush1.msra.mxu0 0.0
        %2012 = vmatprep.subr.mxu0 0.0
        %2013 = vmatpush1.msra.mxu0 0.0
        %2014 = vmatprep.subr.mxu0 0.0
        %2015 = vmatpush1.msra.mxu0 0.0
        %2016 = vmatprep.subr.mxu0 0.0
        %2017 = vmatpush1.msra.mxu0 0.0
        %2018 = vmatprep.subr.mxu0 0.0
        %2019 = vmatpush1.msra.mxu0 0.0
        %2020 = vmatprep.subr.mxu0 0.0
        %2021 = vmatpush1.msra.mxu0 0.0
        %2022 = vmatprep.subr.mxu0 0.0
        %2023 = vmatpush1.msra.mxu0 0.0
        %2024 = vmatprep.subr.mxu0 0.0
        %2025 = vmatpush1.msra.mxu0 0.0
        %2026 = vmatprep.subr.mxu0 0.0
        %2027 = vmatpush1.msra.mxu0 0.0
        %2028 = vmatprep.subr.mxu0 0.0
        %2029 = vmatpush1.msra.mxu0 0.0
        %2030 = vmatprep.subr.mxu0 0.0
        %2031 = vmatpush1.msra.mxu0 0.0
        %2032 = vmatprep.subr.mxu0 0.0
        %2033 = vmatpush1.msra.mxu0 0.0
        %2034 = vmatprep.subr.mxu0 0.0
        %2035 = vmatpush1.msra.mxu0 0.0
        %2036 = vmatprep.subr.mxu0 0.0
        %2037 = vmatpush1.msra.mxu0 0.0
        %2038 = vmatprep.subr.mxu0 0.0
        %2039 = vmatpush1.msra.mxu0 0.0
        %2040 = vmatprep.subr.mxu0 0.0
        %2041 = vmatpush1.msra.mxu0 0.0
        %2042 = vmatprep.subr.mxu0 0.0
        %2043 = vmatpush1.msra.mxu0 0.0
        %2044 = vmatprep.mubr.f32.mxu0 0.0
        %2045 = vmatmul.mubr.f32.gmra.mrb[0].mxu0 %v1974
        %v2046 = vpop.f32.mrb[0].mxu0
        %v2047 = vadd.f32 0.0, %v2046
        %v2048 = vpop.f32.mrb[0].mxu0
        %v2049 = vadd.f32 0.0, %v2048
        %2050 = vdwg.mxu0
        %v2051 = vadd.f32 %v1966, %v2047
        %v2052 = vadd.f32 %v1967, %v2049
        %v2053 = vld [vmem:[#allocation3 + $0x4] sm:$0xff]
        %v2054 = vld [vmem:[#allocation3 + $0xc] sm:$0xf]
        %2055 = vrot.lane.b32.xlu0 %v1763, 1
        %v2056 = vpop.permute.xlu0 %2055
        %v2057 = vrot.slane %v2056, 4
        %v2058 = vsel %vm964, %v2057, %v2056
        %v2061 = vmul.f32 %v2053, %v2058
        %v2062 = vmul.f32 %v2054, %v2057
        %s2063 = scalar_lea.vmem %s7, 20
        %v2064 = vld [vmem:[%s2063] sm:$0xf]
        %v2067 = vcombine.high %v2061, %v2061
        %2068 = vrot.lane.b32.xlu0 %v2061, 127
        %v2069 = vpop.permute.xlu0 %2068
        %2070 = vrot.lane.b32.xlu0 %v2067, 127
        %v2071 = vpop.permute.xlu0 %2070
        %2072 = vrot.lane.b32.xlu0 %v2062, 127
        %v2073 = vpop.permute.xlu0 %2072
        %v2074 = vsel %vm945, %v2069, %v2071
        %v2075 = vsel %vm945, %v2071, %v2073
        %v2077 = vsel %vm1582, %v2064, 0
        %v2079 = vsel %vm1586, %v2074, 0
        %v2081 = vsel %vm1586, %v2075, 0
        %2083 = vmatprep.subr.mxu0 %v2081
        %2084 = vmatpush1.msra.mxu0 %v2079
        %2085 = vmatprep.subr.mxu0 0.0
        %2086 = vmatpush1.msra.mxu0 0.0
        %2087 = vmatprep.subr.mxu0 0.0
        %2088 = vmatpush1.msra.mxu0 0.0
        %2089 = vmatprep.subr.mxu0 0.0
        %2090 = vmatpush1.msra.mxu0 0.0
        %2091 = vmatprep.subr.mxu0 0.0
        %2092 = vmatpush1.msra.mxu0 0.0
        %2093 = vmatprep.subr.mxu0 0.0
        %2094 = vmatpush1.msra.mxu0 0.0
        %2095 = vmatprep.subr.mxu0 0.0
        %2096 = vmatpush1.msra.mxu0 0.0
        %2097 = vmatprep.subr.mxu0 0.0
        %2098 = vmatpush1.msra.mxu0 0.0
        %2099 = vmatprep.subr.mxu0 0.0
        %2100 = vmatpush1.msra.mxu0 0.0
        %2101 = vmatprep.subr.mxu0 0.0
        %2102 = vmatpush1.msra.mxu0 0.0
        %2103 = vmatprep.subr.mxu0 0.0
        %2104 = vmatpush1.msra.mxu0 0.0
        %2105 = vmatprep.subr.mxu0 0.0
        %2106 = vmatpush1.msra.mxu0 0.0
        %2107 = vmatprep.subr.mxu0 0.0
        %2108 = vmatpush1.msra.mxu0 0.0
        %2109 = vmatprep.subr.mxu0 0.0
        %2110 = vmatpush1.msra.mxu0 0.0
        %2111 = vmatprep.subr.mxu0 0.0
        %2112 = vmatpush1.msra.mxu0 0.0
        %2113 = vmatprep.subr.mxu0 0.0
        %2114 = vmatpush1.msra.mxu0 0.0
        %2115 = vmatprep.subr.mxu0 0.0
        %2116 = vmatpush1.msra.mxu0 0.0
        %2117 = vmatprep.subr.mxu0 0.0
        %2118 = vmatpush1.msra.mxu0 0.0
        %2119 = vmatprep.subr.mxu0 0.0
        %2120 = vmatpush1.msra.mxu0 0.0
        %2121 = vmatprep.subr.mxu0 0.0
        %2122 = vmatpush1.msra.mxu0 0.0
        %2123 = vmatprep.subr.mxu0 0.0
        %2124 = vmatpush1.msra.mxu0 0.0
        %2125 = vmatprep.subr.mxu0 0.0
        %2126 = vmatpush1.msra.mxu0 0.0
        %2127 = vmatprep.subr.mxu0 0.0
        %2128 = vmatpush1.msra.mxu0 0.0
        %2129 = vmatprep.subr.mxu0 0.0
        %2130 = vmatpush1.msra.mxu0 0.0
        %2131 = vmatprep.subr.mxu0 0.0
        %2132 = vmatpush1.msra.mxu0 0.0
        %2133 = vmatprep.subr.mxu0 0.0
        %2134 = vmatpush1.msra.mxu0 0.0
        %2135 = vmatprep.subr.mxu0 0.0
        %2136 = vmatpush1.msra.mxu0 0.0
        %2137 = vmatprep.subr.mxu0 0.0
        %2138 = vmatpush1.msra.mxu0 0.0
        %2139 = vmatprep.subr.mxu0 0.0
        %2140 = vmatpush1.msra.mxu0 0.0
        %2141 = vmatprep.subr.mxu0 0.0
        %2142 = vmatpush1.msra.mxu0 0.0
        %2143 = vmatprep.subr.mxu0 0.0
        %2144 = vmatpush1.msra.mxu0 0.0
        %2145 = vmatprep.subr.mxu0 0.0
        %2146 = vmatpush1.msra.mxu0 0.0
        %2147 = vmatprep.mubr.f32.mxu0 0.0
        %2148 = vmatmul.mubr.f32.gmra.mrb[0].mxu0 %v2077
        %v2149 = vpop.f32.mrb[0].mxu0
        %v2150 = vadd.f32 0.0, %v2149
        %v2151 = vpop.f32.mrb[0].mxu0
        %v2152 = vadd.f32 0.0, %v2151
        %2153 = vdwg.mxu0
        %v2154 = vadd.f32 %v2051, %v2150
        %v2155 = vadd.f32 %v2052, %v2152
        %v2156 = vld [vmem:[#allocation3 + $0x4] sm:$0xff]
        %v2157 = vld [vmem:[#allocation3 + $0xc] sm:$0xf]
        %2158 = vrot.lane.b32.xlu0 %v1559, 15
        %v2159 = vpop.permute.xlu0 %2158
        %v2160 = vrot.slane %v2159, 4
        %v2161 = vsel %vm860, %v2160, %v2159
        %v2164 = vmul.f32 %v2156, %v2161
        %v2165 = vmul.f32 %v2157, %v2160
        %s2166 = scalar_lea.vmem %s7, 24
        %v2167 = vld [vmem:[%s2166] sm:$0xf]
        %v2170 = vcombine.high %v2164, %v2164
        %2171 = vrot.lane.b32.xlu0 %v2164, 113
        %v2172 = vpop.permute.xlu0 %2171
        %2173 = vrot.lane.b32.xlu0 %v2170, 113
        %v2174 = vpop.permute.xlu0 %2173
        %2175 = vrot.lane.b32.xlu0 %v2165, 113
        %v2176 = vpop.permute.xlu0 %2175
        %v2177 = vsel %vm841, %v2172, %v2174
        %v2178 = vsel %vm841, %v2174, %v2176
        %v2180 = vsel %vm1582, %v2167, 0
        %v2182 = vsel %vm1586, %v2177, 0
        %v2184 = vsel %vm1586, %v2178, 0
        %2186 = vmatprep.subr.mxu0 %v2184
        %2187 = vmatpush1.msra.mxu0 %v2182
        %2188 = vmatprep.subr.mxu0 0.0
        %2189 = vmatpush1.msra.mxu0 0.0
        %2190 = vmatprep.subr.mxu0 0.0
        %2191 = vmatpush1.msra.mxu0 0.0
        %2192 = vmatprep.subr.mxu0 0.0
        %2193 = vmatpush1.msra.mxu0 0.0
        %2194 = vmatprep.subr.mxu0 0.0
        %2195 = vmatpush1.msra.mxu0 0.0
        %2196 = vmatprep.subr.mxu0 0.0
        %2197 = vmatpush1.msra.mxu0 0.0
        %2198 = vmatprep.subr.mxu0 0.0
        %2199 = vmatpush1.msra.mxu0 0.0
        %2200 = vmatprep.subr.mxu0 0.0
        %2201 = vmatpush1.msra.mxu0 0.0
        %2202 = vmatprep.subr.mxu0 0.0
        %2203 = vmatpush1.msra.mxu0 0.0
        %2204 = vmatprep.subr.mxu0 0.0
        %2205 = vmatpush1.msra.mxu0 0.0
        %2206 = vmatprep.subr.mxu0 0.0
        %2207 = vmatpush1.msra.mxu0 0.0
        %2208 = vmatprep.subr.mxu0 0.0
        %2209 = vmatpush1.msra.mxu0 0.0
        %2210 = vmatprep.subr.mxu0 0.0
        %2211 = vmatpush1.msra.mxu0 0.0
        %2212 = vmatprep.subr.mxu0 0.0
        %2213 = vmatpush1.msra.mxu0 0.0
        %2214 = vmatprep.subr.mxu0 0.0
        %2215 = vmatpush1.msra.mxu0 0.0
        %2216 = vmatprep.subr.mxu0 0.0
        %2217 = vmatpush1.msra.mxu0 0.0
        %2218 = vmatprep.subr.mxu0 0.0
        %2219 = vmatpush1.msra.mxu0 0.0
        %2220 = vmatprep.subr.mxu0 0.0
        %2221 = vmatpush1.msra.mxu0 0.0
        %2222 = vmatprep.subr.mxu0 0.0
        %2223 = vmatpush1.msra.mxu0 0.0
        %2224 = vmatprep.subr.mxu0 0.0
        %2225 = vmatpush1.msra.mxu0 0.0
        %2226 = vmatprep.subr.mxu0 0.0
        %2227 = vmatpush1.msra.mxu0 0.0
        %2228 = vmatprep.subr.mxu0 0.0
        %2229 = vmatpush1.msra.mxu0 0.0
        %2230 = vmatprep.subr.mxu0 0.0
        %2231 = vmatpush1.msra.mxu0 0.0
        %2232 = vmatprep.subr.mxu0 0.0
        %2233 = vmatpush1.msra.mxu0 0.0
        %2234 = vmatprep.subr.mxu0 0.0
        %2235 = vmatpush1.msra.mxu0 0.0
        %2236 = vmatprep.subr.mxu0 0.0
        %2237 = vmatpush1.msra.mxu0 0.0
        %2238 = vmatprep.subr.mxu0 0.0
        %2239 = vmatpush1.msra.mxu0 0.0
        %2240 = vmatprep.subr.mxu0 0.0
        %2241 = vmatpush1.msra.mxu0 0.0
        %2242 = vmatprep.subr.mxu0 0.0
        %2243 = vmatpush1.msra.mxu0 0.0
        %2244 = vmatprep.subr.mxu0 0.0
        %2245 = vmatpush1.msra.mxu0 0.0
        %2246 = vmatprep.subr.mxu0 0.0
        %2247 = vmatpush1.msra.mxu0 0.0
        %2248 = vmatprep.subr.mxu0 0.0
        %2249 = vmatpush1.msra.mxu0 0.0
        %2250 = vmatprep.mubr.f32.mxu0 0.0
        %2251 = vmatmul.mubr.f32.gmra.mrb[0].mxu0 %v2180
        %v2252 = vpop.f32.mrb[0].mxu0
        %v2253 = vadd.f32 0.0, %v2252
        %v2254 = vpop.f32.mrb[0].mxu0
        %v2255 = vadd.f32 0.0, %v2254
        %2256 = vdwg.mxu0
        %v2257 = vadd.f32 %v2154, %v2253
        %v2258 = vadd.f32 %v2155, %v2255
        %v2259 = vld [vmem:[#allocation3 + $0x4] sm:$0xff]
        %v2260 = vld [vmem:[#allocation3 + $0xc] sm:$0xf]
        %s2261 = scalar_lea.vmem %s7, 28
        %v2262 = vld [vmem:[%s2261] sm:$0xf]
        %v2265 = vcombine.high %v2259, %v2259
        %2266 = vrot.lane.b32.xlu0 %v2259, 112
        %v2267 = vpop.permute.xlu0 %2266
        %2268 = vrot.lane.b32.xlu0 %v2265, 112
        %v2269 = vpop.permute.xlu0 %2268
        %2270 = vrot.lane.b32.xlu0 %v2260, 112
        %v2271 = vpop.permute.xlu0 %2270
        %v2272 = vsel %vm1341, %v2267, %v2269
        %v2273 = vsel %vm1341, %v2269, %v2271
        %v2275 = vsel %vm1582, %v2262, 0
        %v2277 = vsel %vm1586, %v2272, 0
        %v2279 = vsel %vm1586, %v2273, 0
        %2281 = vmatprep.subr.mxu0 %v2279
        %2282 = vmatpush1.msra.mxu0 %v2277
        %2283 = vmatprep.subr.mxu0 0.0
        %2284 = vmatpush1.msra.mxu0 0.0
        %2285 = vmatprep.subr.mxu0 0.0
        %2286 = vmatpush1.msra.mxu0 0.0
        %2287 = vmatprep.subr.mxu0 0.0
        %2288 = vmatpush1.msra.mxu0 0.0
        %2289 = vmatprep.subr.mxu0 0.0
        %2290 = vmatpush1.msra.mxu0 0.0
        %2291 = vmatprep.subr.mxu0 0.0
        %2292 = vmatpush1.msra.mxu0 0.0
        %2293 = vmatprep.subr.mxu0 0.0
        %2294 = vmatpush1.msra.mxu0 0.0
        %2295 = vmatprep.subr.mxu0 0.0
        %2296 = vmatpush1.msra.mxu0 0.0
        %2297 = vmatprep.subr.mxu0 0.0
        %2298 = vmatpush1.msra.mxu0 0.0
        %2299 = vmatprep.subr.mxu0 0.0
        %2300 = vmatpush1.msra.mxu0 0.0
        %2301 = vmatprep.subr.mxu0 0.0
        %2302 = vmatpush1.msra.mxu0 0.0
        %2303 = vmatprep.subr.mxu0 0.0
        %2304 = vmatpush1.msra.mxu0 0.0
        %2305 = vmatprep.subr.mxu0 0.0
        %2306 = vmatpush1.msra.mxu0 0.0
        %2307 = vmatprep.subr.mxu0 0.0
        %2308 = vmatpush1.msra.mxu0 0.0
        %2309 = vmatprep.subr.mxu0 0.0
        %2310 = vmatpush1.msra.mxu0 0.0
        %2311 = vmatprep.subr.mxu0 0.0
        %2312 = vmatpush1.msra.mxu0 0.0
        %2313 = vmatprep.subr.mxu0 0.0
        %2314 = vmatpush1.msra.mxu0 0.0
        %2315 = vmatprep.subr.mxu0 0.0
        %2316 = vmatpush1.msra.mxu0 0.0
        %2317 = vmatprep.subr.mxu0 0.0
        %2318 = vmatpush1.msra.mxu0 0.0
        %2319 = vmatprep.subr.mxu0 0.0
        %2320 = vmatpush1.msra.mxu0 0.0
        %2321 = vmatprep.subr.mxu0 0.0
        %2322 = vmatpush1.msra.mxu0 0.0
        %2323 = vmatprep.subr.mxu0 0.0
        %2324 = vmatpush1.msra.mxu0 0.0
        %2325 = vmatprep.subr.mxu0 0.0
        %2326 = vmatpush1.msra.mxu0 0.0
        %2327 = vmatprep.subr.mxu0 0.0
        %2328 = vmatpush1.msra.mxu0 0.0
        %2329 = vmatprep.subr.mxu0 0.0
        %2330 = vmatpush1.msra.mxu0 0.0
        %2331 = vmatprep.subr.mxu0 0.0
        %2332 = vmatpush1.msra.mxu0 0.0
        %2333 = vmatprep.subr.mxu0 0.0
        %2334 = vmatpush1.msra.mxu0 0.0
        %2335 = vmatprep.subr.mxu0 0.0
        %2336 = vmatpush1.msra.mxu0 0.0
        %2337 = vmatprep.subr.mxu0 0.0
        %2338 = vmatpush1.msra.mxu0 0.0
        %2339 = vmatprep.subr.mxu0 0.0
        %2340 = vmatpush1.msra.mxu0 0.0
        %2341 = vmatprep.subr.mxu0 0.0
        %2342 = vmatpush1.msra.mxu0 0.0
        %2343 = vmatprep.subr.mxu0 0.0
        %2344 = vmatpush1.msra.mxu0 0.0
        %2345 = vmatprep.mubr.f32.mxu0 0.0
        %2346 = vmatmul.mubr.f32.gmra.mrb[0].mxu0 %v2275
        %v2347 = vpop.f32.mrb[0].mxu0
        %v2348 = vadd.f32 0.0, %v2347
        %v2349 = vpop.f32.mrb[0].mxu0
        %v2350 = vadd.f32 0.0, %v2349
        %2351 = vdwg.mxu0
        %v2352 = vadd.f32 %v2257, %v2348
        %v2353 = vadd.f32 %v2258, %v2350
        %v2354 = vld [vmem:[#allocation3 + $0x4] sm:$0xff]
        %v2355 = vld [vmem:[#allocation3 + $0xc] sm:$0xf]
        %2356 = vrot.lane.b32.xlu0 %v1763, 17
        %v2357 = vpop.permute.xlu0 %2356
        %v2358 = vrot.slane %v2357, 4
        %v2359 = vsel %vm747, %v2358, %v2357
        %v2362 = vmul.f32 %v2354, %v2359
        %v2363 = vmul.f32 %v2355, %v2358
        %s2364 = scalar_lea.vmem %s7, 32
        %v2365 = vld [vmem:[%s2364] sm:$0xf]
        %v2368 = vcombine.high %v2362, %v2362
        %2369 = vrot.lane.b32.xlu0 %v2362, 111
        %v2370 = vpop.permute.xlu0 %2369
        %2371 = vrot.lane.b32.xlu0 %v2368, 111
        %v2372 = vpop.permute.xlu0 %2371
        %2373 = vrot.lane.b32.xlu0 %v2363, 111
        %v2374 = vpop.permute.xlu0 %2373
        %v2375 = vsel %vm638, %v2370, %v2372
        %v2376 = vsel %vm638, %v2372, %v2374
        %v2378 = vsel %vm1582, %v2365, 0
        %v2380 = vsel %vm1586, %v2375, 0
        %v2382 = vsel %vm1586, %v2376, 0
        %2384 = vmatprep.subr.mxu0 %v2382
        %2385 = vmatpush1.msra.mxu0 %v2380
        %2386 = vmatprep.subr.mxu0 0.0
        %2387 = vmatpush1.msra.mxu0 0.0
        %2388 = vmatprep.subr.mxu0 0.0
        %2389 = vmatpush1.msra.mxu0 0.0
        %2390 = vmatprep.subr.mxu0 0.0
        %2391 = vmatpush1.msra.mxu0 0.0
        %2392 = vmatprep.subr.mxu0 0.0
        %2393 = vmatpush1.msra.mxu0 0.0
        %2394 = vmatprep.subr.mxu0 0.0
        %2395 = vmatpush1.msra.mxu0 0.0
        %2396 = vmatprep.subr.mxu0 0.0
        %2397 = vmatpush1.msra.mxu0 0.0
        %2398 = vmatprep.subr.mxu0 0.0
        %2399 = vmatpush1.msra.mxu0 0.0
        %2400 = vmatprep.subr.mxu0 0.0
        %2401 = vmatpush1.msra.mxu0 0.0
        %2402 = vmatprep.subr.mxu0 0.0
        %2403 = vmatpush1.msra.mxu0 0.0
        %2404 = vmatprep.subr.mxu0 0.0
        %2405 = vmatpush1.msra.mxu0 0.0
        %2406 = vmatprep.subr.mxu0 0.0
        %2407 = vmatpush1.msra.mxu0 0.0
        %2408 = vmatprep.subr.mxu0 0.0
        %2409 = vmatpush1.msra.mxu0 0.0
        %2410 = vmatprep.subr.mxu0 0.0
        %2411 = vmatpush1.msra.mxu0 0.0
        %2412 = vmatprep.subr.mxu0 0.0
        %2413 = vmatpush1.msra.mxu0 0.0
        %2414 = vmatprep.subr.mxu0 0.0
        %2415 = vmatpush1.msra.mxu0 0.0
        %2416 = vmatprep.subr.mxu0 0.0
        %2417 = vmatpush1.msra.mxu0 0.0
        %2418 = vmatprep.subr.mxu0 0.0
        %2419 = vmatpush1.msra.mxu0 0.0
        %2420 = vmatprep.subr.mxu0 0.0
        %2421 = vmatpush1.msra.mxu0 0.0
        %2422 = vmatprep.subr.mxu0 0.0
        %2423 = vmatpush1.msra.mxu0 0.0
        %2424 = vmatprep.subr.mxu0 0.0
        %2425 = vmatpush1.msra.mxu0 0.0
        %2426 = vmatprep.subr.mxu0 0.0
        %2427 = vmatpush1.msra.mxu0 0.0
        %2428 = vmatprep.subr.mxu0 0.0
        %2429 = vmatpush1.msra.mxu0 0.0
        %2430 = vmatprep.subr.mxu0 0.0
        %2431 = vmatpush1.msra.mxu0 0.0
        %2432 = vmatprep.subr.mxu0 0.0
        %2433 = vmatpush1.msra.mxu0 0.0
        %2434 = vmatprep.subr.mxu0 0.0
        %2435 = vmatpush1.msra.mxu0 0.0
        %2436 = vmatprep.subr.mxu0 0.0
        %2437 = vmatpush1.msra.mxu0 0.0
        %2438 = vmatprep.subr.mxu0 0.0
        %2439 = vmatpush1.msra.mxu0 0.0
        %2440 = vmatprep.subr.mxu0 0.0
        %2441 = vmatpush1.msra.mxu0 0.0
        %2442 = vmatprep.subr.mxu0 0.0
        %2443 = vmatpush1.msra.mxu0 0.0
        %2444 = vmatprep.subr.mxu0 0.0
        %2445 = vmatpush1.msra.mxu0 0.0
        %2446 = vmatprep.subr.mxu0 0.0
        %2447 = vmatpush1.msra.mxu0 0.0
        %2448 = vmatprep.mubr.f32.mxu0 0.0
        %2449 = vmatmul.mubr.f32.gmra.mrb[0].mxu0 %v2378
        %v2450 = vpop.f32.mrb[0].mxu0
        %v2451 = vadd.f32 0.0, %v2450
        %v2452 = vpop.f32.mrb[0].mxu0
        %v2453 = vadd.f32 0.0, %v2452
        %2454 = vdwg.mxu0
        %v2455 = vadd.f32 %v2352, %v2451
        %v2456 = vadd.f32 %v2353, %v2453
        %v2457 = vld [vmem:[%s8] sm:$0xf]
        %2459 = vset.pattern.permute.xlu0 0
        %2460 = vperm.xlu0 %2459, %v2457
        %v2461 = vpop.permute.xlu0 %2460
        %v2463 = vmul.f32 %v2455, %v2461
        %v2464 = vmul.f32 %v2456, %v2461
        %v2465 = vld [vmem:[%s9] sm:$0xf]
        %2467 = vset.pattern.permute.xlu0 0
        %2468 = vperm.xlu0 %2467, %v2465
        %v2469 = vpop.permute.xlu0 %2468
        %v2471 = vadd.f32 %v2463, %v2469
        %v2472 = vadd.f32 %v2464, %v2469
        %v2473 = vmax.f32 %v2471, 0.0
        %v2474 = vmax.f32 %v2472, 0.0
        %v2477 = vcombine.low %v2473, %v2474
        %2479 = vst [vmem:[%s407] sm:$0xff] %v2477
        %s2480 = sand.u32 %s275, 1
        %s2481 = scalar_lea.sflag [#allocation6], %s2480
        %s2482 = sand.u32 %s275, 1
        %s2483 = smul.addr %s2482, 8
        %s2484 = scalar_lea.vmem [#allocation7], %s2483
        // Predicated region
        $region69: #{tpu_custom_call.1} parent=63 // pred_check
          %p2485 = pneg %p285
        $region70: #{tpu_custom_call.1} parent=63 // pred_check_branch
          %2487 = sbr.rel (%p2485) target = $region72
        $region71: #{tpu_custom_call.1} parent=63 // pred_region
          %s2489 = ssub.s32 128, 128
          %2490 = vsyncadd %s2481, %s2489
          %s2491 = smul.addr %s26, 2
          %s2492 = smul.addr %s2491, 64
          %s2493 = scalar_lea.hbm %s11, %s2492
          %s2495 = sshll.u32 %s2484, 4
          %s2496 = int_to_ptr.vmem [resolvable:$true] %s2495
          %2498 = dma.vmem_to_hbm [thread:$0]  %s2496, 128, %s2493, %s2481
        $region72: #{tpu_custom_call.1} parent=63 // pred_fallthru
          _
      $region64: #{tpu_custom_call.1} parent=5 // pred_fallthru
        _
      %p2499 = scmp.le.s32.totalorder 2, %s21
      // Predicated region
      $region73: #{tpu_custom_call.1} parent=5 // pred_check
        %p2500 = pneg %p2499
      $region74: #{tpu_custom_call.1} parent=5 // pred_check_branch
        %2502 = sbr.rel (%p2500) target = $region76
      $region75: #{tpu_custom_call.1} parent=5 // pred_region
        %s2503 = ssub.s32 %s21, 2
        // Predicated region
        $region77: #{tpu_custom_call.1} parent=75 // pred_check
          %p2504 = pneg %p291
        $region78: #{tpu_custom_call.1} parent=75 // pred_check_branch
          %2506 = sbr.rel (%p2504) target = $region80
        $region79: #{tpu_custom_call.1} parent=75 // pred_region
          %s2507 = sand.u32 %s276, 1
          %s2508 = scalar_lea.sflag [#allocation6], %s2507
          %s2509 = sand.u32 %s276, 1
          %s2510 = smul.addr %s2509, 8
          %s2511 = scalar_lea.vmem [#allocation7], %s2510
          %2512 = dma.done %s2508, 128
        $region80: #{tpu_custom_call.1} parent=75 // pred_fallthru
          _
      $region76: #{tpu_custom_call.1} parent=5 // pred_fallthru
        _
    $region6: #{tpu_custom_call.1} parent=1 // loop_footer
      %s25 = sadd.s32 1, %s21
    $region7: #{tpu_custom_call.1} parent=1 // loop_footer_branch
      %20 = sbr.rel target = $region3
    $region8: #{tpu_custom_call.1} parent=1 // loop_exit
      _
    %2513 = vsyncpa [#allocation5], 1
    %s2514 = scalar_lea.sflag [#allocation5], 1
    %2515 = vsyncpa %s2514, 1
    %2516 = vsyncpa [#allocation6], 1
    %s2517 = scalar_lea.sflag [#allocation6], 1
    %2518 = vsyncpa %s2517, 1

</llo_original>
